<compile_context>
chip_gen: v7x
topology: tpu7x:2x2x1
jax: 0.10.0
libtpu: 0.0.40
codegen_flags: <defaults>
</compile_context>

<pallas_src>
import functools

import jax
import jax.numpy as jnp
from jax.experimental import pallas as pl
from jax.experimental.pallas import tpu as pltpu


# ----------------------------- Pallas kernel -------------------------------

def _batchnorm(h, gamma, beta, eps=1e-5):
    # training-mode BatchNorm1d: batch mean, biased variance (f32)
    mean = jnp.mean(h, axis=0, keepdims=True)
    var = jnp.mean((h - mean) ** 2, axis=0, keepdims=True)
    return (h - mean) * jax.lax.rsqrt(var + eps) * gamma + beta


def _gps_fused_kernel(feat_ref, a_ref, pre_w_ref, pre_b_ref, post_w_ref,
                      post_b_ref, gcn_w_ref, wqkv_ref, wo_ref, ffw1_ref,
                      ffw2_ref, vec_ref, fb1_ref,
                      out_ref, x_ref, *, num_heads):
    layer = pl.program_id(0)
    bf16 = jnp.bfloat16

    # ---- pre_mp + ReLU (dropout = identity), first grid step only ----
    @pl.when(layer == 0)
    def _():
        y = jnp.dot(feat_ref[...].astype(bf16), pre_w_ref[...],
                    preferred_element_type=jnp.float32) + pre_b_ref[...]
        x_ref[...] = jnp.maximum(y, 0.0)

    x = x_ref[...]                               # (N, H) f32 residual stream
    n, h_dim = x.shape
    hd = h_dim // num_heads
    xb = x.astype(bf16)

    vecs = vec_ref[...]                          # (9, H) f32 packed vectors
    gcn_b, g1l, b1l = vecs[0:1], vecs[1:2], vecs[2:3]
    bo, g1a, b1a = vecs[3:4], vecs[4:5], vecs[5:6]
    fb2, g2, b2 = vecs[6:7], vecs[7:8], vecs[8:9]

    # ---- local MPNN (GCNConv) + residual + BN ----
    xw = jnp.dot(xb, gcn_w_ref[...], preferred_element_type=jnp.float32)
    h_local = jnp.dot(a_ref[...], xw.astype(bf16),
                      preferred_element_type=jnp.float32) + gcn_b
    h_local = _batchnorm(x + h_local, g1l, b1l)

    # ---- global softmax multi-head self-attention (batched over heads) ----
    xh = jnp.broadcast_to(xb, (num_heads, n, h_dim))           # (nh, N, H) bf16
    qh = jnp.einsum('hnc,hcd->hnd', xh, wqkv_ref[0],
                    preferred_element_type=jnp.float32)
    kh = jnp.einsum('hnc,hcd->hnd', xh, wqkv_ref[1],
                    preferred_element_type=jnp.float32)
    vh = jnp.einsum('hnc,hcd->hnd', xh, wqkv_ref[2],
                    preferred_element_type=jnp.float32)
    scale = 1.0 / (float(hd) ** 0.5)
    s = jnp.einsum('hqd,hkd->hqk', qh.astype(bf16), kh.astype(bf16),
                   preferred_element_type=jnp.float32) * scale
    s = s - jnp.max(s, axis=-1, keepdims=True)
    p = jnp.exp(s)
    p = p * pl.reciprocal(jnp.sum(p, axis=-1, keepdims=True), approx=True)
    oh = jnp.einsum('hqk,hkd->hqd', p.astype(bf16), vh.astype(bf16),
                    preferred_element_type=jnp.float32)
    attn = jnp.sum(jnp.einsum('hnd,hdk->hnk', oh.astype(bf16), wo_ref[...],
                              preferred_element_type=jnp.float32),
                   axis=0) + bo
    h_attn = _batchnorm(x + attn, g1a, b1a)

    # ---- combine branches + feed-forward block + residual + BN ----
    h = h_local + h_attn
    f = jnp.dot(h.astype(bf16), ffw1_ref[...],
                preferred_element_type=jnp.float32) + fb1_ref[...]
    f = jnp.maximum(f, 0.0)
    f = jnp.dot(f.astype(bf16), ffw2_ref[...],
                preferred_element_type=jnp.float32) + fb2
    h = _batchnorm(h + f, g2, b2)

    x_ref[...] = h                               # carry to next layer

    # ---- post_mp, last grid step only ----
    @pl.when(layer == pl.num_programs(0) - 1)
    def _():
        out_ref[...] = jnp.dot(h.astype(bf16), post_w_ref[...],
                               preferred_element_type=jnp.float32) + post_b_ref[...]


# ------------------------------ glue (JAX) ---------------------------------

def gcn_norm_adj(edge_index, num_nodes):
    """Dense D^{-1/2}(A + I)D^{-1/2}; self-loops added only where missing."""
    src, dst = edge_index
    a = jnp.zeros((num_nodes, num_nodes), jnp.float32)
    a = a.at[dst, src].set(1.0)
    a = jnp.maximum(a, jnp.eye(num_nodes, dtype=jnp.float32))
    deg = jnp.sum(a, axis=1)
    dinv = 1.0 / jnp.sqrt(deg)
    return a * dinv[:, None] * dinv[None, :]


def init_params(key, in_channels, out_channels, hidden, num_layers):
    ks = iter(jax.random.split(key, 8 + num_layers * 16))

    def dense(k, fan_in, fan_out):
        bound = 1.0 / (fan_in ** 0.5)
        return jax.random.uniform(k, (fan_in, fan_out), jnp.float32, -bound, bound)

    params = {
        "pre_w": dense(next(ks), in_channels, hidden),
        "pre_b": jax.random.uniform(next(ks), (hidden,), jnp.float32, -0.1, 0.1),
        "post_w": dense(next(ks), hidden, out_channels),
        "post_b": jax.random.uniform(next(ks), (out_channels,), jnp.float32, -0.1, 0.1),
        "layers": [],
    }
    for _ in range(num_layers):
        lp = {
            "gcn_w": dense(next(ks), hidden, hidden),
            "gcn_b": jnp.zeros((hidden,), jnp.float32),
            "bn1l_g": jnp.ones((hidden,), jnp.float32),
            "bn1l_b": jnp.zeros((hidden,), jnp.float32),
            "wq": dense(next(ks), hidden, hidden),
            "wk": dense(next(ks), hidden, hidden),
            "wv": dense(next(ks), hidden, hidden),
            "wo": dense(next(ks), hidden, hidden),
            "bo": jnp.zeros((hidden,), jnp.float32),
            "bn1a_g": jnp.ones((hidden,), jnp.float32),
            "bn1a_b": jnp.zeros((hidden,), jnp.float32),
            "ff_w1": dense(next(ks), hidden, 2 * hidden),
            "ff_b1": jax.random.uniform(next(ks), (2 * hidden,), jnp.float32, -0.05, 0.05),
            "ff_w2": dense(next(ks), 2 * hidden, hidden),
            "ff_b2": jax.random.uniform(next(ks), (hidden,), jnp.float32, -0.05, 0.05),
            "bn2_g": jnp.ones((hidden,), jnp.float32),
            "bn2_b": jnp.zeros((hidden,), jnp.float32),
        }
        params["layers"].append(lp)
    return params


def pack_params(params, num_heads):
    """Stack per-layer weights along a leading L axis, split attention weights
    per head, cast matmul operands to bf16, pack small vectors together."""
    hidden = params["pre_w"].shape[1]
    assert hidden % num_heads == 0, "hidden_channels must divide num_heads"
    hd = hidden // num_heads
    layers = params["layers"]
    bf16 = jnp.bfloat16

    def split_qkv(w):  # (H, H) -> (heads, H, hd), head-major output channels
        return jnp.transpose(w.reshape(hidden, num_heads, hd), (1, 0, 2))

    return {
        "pre_w": params["pre_w"].astype(bf16),
        "pre_b": params["pre_b"].reshape(1, -1),
        "post_w": params["post_w"].astype(bf16),
        "post_b": params["post_b"].reshape(1, -1),
        "gcn_w": jnp.stack([lp["gcn_w"] for lp in layers]).astype(bf16),
        "wqkv": jnp.stack([jnp.stack([split_qkv(lp["wq"]),
                                      split_qkv(lp["wk"]),
                                      split_qkv(lp["wv"])])
                           for lp in layers]).astype(bf16),
        "wo": jnp.stack([lp["wo"].reshape(num_heads, hd, hidden)
                         for lp in layers]).astype(bf16),
        "ffw1": jnp.stack([lp["ff_w1"] for lp in layers]).astype(bf16),
        "ffw2": jnp.stack([lp["ff_w2"] for lp in layers]).astype(bf16),
        "vecs": jnp.stack([jnp.stack([lp["gcn_b"], lp["bn1l_g"], lp["bn1l_b"],
                                      lp["bo"], lp["bn1a_g"], lp["bn1a_b"],
                                      lp["ff_b2"], lp["bn2_g"], lp["bn2_b"]])
                           for lp in layers]),
        "ffb1": jnp.stack([lp["ff_b1"].reshape(1, -1) for lp in layers]),
    }


def gps_model(packed, node_feat, a_hat, *, num_heads):
    n, in_ch = node_feat.shape
    hidden = packed["pre_w"].shape[1]
    out_ch = packed["post_w"].shape[1]
    num_layers = packed["gcn_w"].shape[0]
    hd = hidden // num_heads
    nh = num_heads

    const2 = lambda l: (0, 0)
    in_specs = [
        pl.BlockSpec((n, in_ch), const2),                                 # feat
        pl.BlockSpec((n, n), const2),                                     # A_hat
        pl.BlockSpec((in_ch, hidden), const2),                            # pre_w
        pl.BlockSpec((1, hidden), const2),                                # pre_b
        pl.BlockSpec((hidden, out_ch), const2),                           # post_w
        pl.BlockSpec((1, out_ch), const2),                                # post_b
        pl.BlockSpec((None, hidden, hidden), lambda l: (l, 0, 0)),        # gcn_w
        pl.BlockSpec((None, 3, nh, hidden, hd), lambda l: (l, 0, 0, 0, 0)),  # wqkv
        pl.BlockSpec((None, nh, hd, hidden), lambda l: (l, 0, 0, 0)),     # wo
        pl.BlockSpec((None, hidden, 2 * hidden), lambda l: (l, 0, 0)),    # ffw1
        pl.BlockSpec((None, 2 * hidden, hidden), lambda l: (l, 0, 0)),    # ffw2
        pl.BlockSpec((None, 9, hidden), lambda l: (l, 0, 0)),             # vecs
        pl.BlockSpec((None, 1, 2 * hidden), lambda l: (l, 0, 0)),         # ff_b1
    ]

    return pl.pallas_call(
        functools.partial(_gps_fused_kernel, num_heads=num_heads),
        out_shape=jax.ShapeDtypeStruct((n, out_ch), jnp.float32),
        grid=(num_layers,),
        in_specs=in_specs,
        out_specs=pl.BlockSpec((n, out_ch), const2),
        scratch_shapes=[pltpu.VMEM((n, hidden), jnp.float32)],
        compiler_params=pltpu.CompilerParams(
            dimension_semantics=("arbitrary",)),
    )(node_feat, a_hat.astype(jnp.bfloat16),
      packed["pre_w"], packed["pre_b"], packed["post_w"], packed["post_b"],
      packed["gcn_w"], packed["wqkv"], packed["wo"], packed["ffw1"],
      packed["ffw2"], packed["vecs"], packed["ffb1"])


# --------------------------------- main -------------------------------------

if __name__ == "__main__":
    N_NODES = 16
    IN_CH = 8
    HIDDEN = 32      # NOTE: toy size; at scale use multiples of 128 for lane density
    OUT_CH = 4
    NUM_LAYERS = 2
    NUM_HEADS = 4

    key = jax.random.PRNGKey(0)
    k_feat, k_params = jax.random.split(key)

    node_feat = jax.random.normal(k_feat, (N_NODES, IN_CH), jnp.float32)

    # undirected ring graph: edges (i -> i+1) and (i+1 -> i)
    src = jnp.arange(N_NODES, dtype=jnp.int32)
    dst = (src + 1) % N_NODES
    edge_index = jnp.stack([jnp.concatenate([src, dst]),
                            jnp.concatenate([dst, src])], axis=0)

    params = init_params(k_params, IN_CH, OUT_CH, HIDDEN, NUM_LAYERS)
    packed = pack_params(params, NUM_HEADS)         # done once, outside forward
    a_hat = gcn_norm_adj(edge_index, N_NODES)       # built once per graph

    fwd = jax.jit(functools.partial(gps_model, num_heads=NUM_HEADS))
    out = fwd(packed, node_feat, a_hat)
    out = jax.block_until_ready(out)

    assert out.shape == (N_NODES, OUT_CH), out.shape
    assert jnp.all(jnp.isfinite(out))
    print("KERNEL_OK")
</pallas_src>

<mosaic_0001>
module attributes {stable_mosaic.version = 11 : i64} {
  func.func @_gps_fused_kernel(%arg0: i32, %arg1: memref<16x8xf32, #tpu.memory_space<vmem>>, %arg2: memref<16x16xbf16, #tpu.memory_space<vmem>>, %arg3: memref<8x32xbf16, #tpu.memory_space<vmem>>, %arg4: memref<1x32xf32, #tpu.memory_space<vmem>>, %arg5: memref<32x4xbf16, #tpu.memory_space<vmem>>, %arg6: memref<1x4xf32, #tpu.memory_space<vmem>>, %arg7: memref<1x32x32xbf16, #tpu.memory_space<vmem>>, %arg8: memref<1x3x4x32x8xbf16, #tpu.memory_space<vmem>>, %arg9: memref<1x4x8x32xbf16, #tpu.memory_space<vmem>>, %arg10: memref<1x32x64xbf16, #tpu.memory_space<vmem>>, %arg11: memref<1x64x32xbf16, #tpu.memory_space<vmem>>, %arg12: memref<1x9x32xf32, #tpu.memory_space<vmem>>, %arg13: memref<1x1x64xf32, #tpu.memory_space<vmem>>, %arg14: memref<16x4xf32, #tpu.memory_space<vmem>>, %arg15: memref<16x32xf32, #tpu.memory_space<vmem>>) attributes {dimension_semantics = [#tpu.dimension_semantics<arbitrary>], iteration_bounds = array<i64: 2>, scalar_prefetch = 0 : i64, scratch_operands = 1 : i64, tpu.core_type = #tpu.core_type<tc>, window_params = [{pipeline_mode = #tpu.pipeline_mode<synchronous>, transform_indices = @transform_0, window_bounds = array<i64: 16, 8>}, {pipeline_mode = #tpu.pipeline_mode<synchronous>, transform_indices = @transform_1, window_bounds = array<i64: 16, 16>}, {pipeline_mode = #tpu.pipeline_mode<synchronous>, transform_indices = @transform_2, window_bounds = array<i64: 8, 32>}, {pipeline_mode = #tpu.pipeline_mode<synchronous>, transform_indices = @transform_3, window_bounds = array<i64: 1, 32>}, {pipeline_mode = #tpu.pipeline_mode<synchronous>, transform_indices = @transform_4, window_bounds = array<i64: 32, 4>}, {pipeline_mode = #tpu.pipeline_mode<synchronous>, transform_indices = @transform_5, window_bounds = array<i64: 1, 4>}, {transform_indices = @transform_6, window_bounds = array<i64: 1, 32, 32>}, {transform_indices = @transform_7, window_bounds = array<i64: 1, 3, 4, 32, 8>}, {transform_indices = @transform_8, window_bounds = array<i64: 1, 4, 8, 32>}, {transform_indices = @transform_9, window_bounds = array<i64: 1, 32, 64>}, {transform_indices = @transform_10, window_bounds = array<i64: 1, 64, 32>}, {transform_indices = @transform_11, window_bounds = array<i64: 1, 9, 32>}, {transform_indices = @transform_12, window_bounds = array<i64: 1, 1, 64>}, {pipeline_mode = #tpu.pipeline_mode<synchronous>, transform_indices = @transform_13, window_bounds = array<i64: 16, 4>}]} {
    %c0_i32 = arith.constant 0 : i32
    %0 = arith.cmpi eq, %arg0, %c0_i32 : i32
    %1 = arith.extui %0 : i1 to i32
    %c0_i32_0 = arith.constant 0 : i32
    %2 = arith.cmpi ne, %1, %c0_i32_0 : i32
    scf.if %2 {
      %c0_68 = arith.constant 0 : index
      %c0_69 = arith.constant 0 : index
      %150 = vector.load %arg1[%c0_68, %c0_69] : memref<16x8xf32, #tpu.memory_space<vmem>>, vector<16x8xf32>
      %151 = arith.truncf %150 : vector<16x8xf32> to vector<16x8xbf16>
      %c0_70 = arith.constant 0 : index
      %c0_71 = arith.constant 0 : index
      %152 = vector.load %arg3[%c0_70, %c0_71] : memref<8x32xbf16, #tpu.memory_space<vmem>>, vector<8x32xbf16>
      %cst_72 = arith.constant dense<0.000000e+00> : vector<16x32xf32>
      %153 = tpu.matmul %151, %152, %cst_72 {dimension_numbers = #tpu.dot_dimension_numbers<[1], [0], [0], [1], [0, 0, 1, 1], [], []>} : vector<16x8xbf16>, vector<8x32xbf16>, vector<16x32xf32> -> vector<16x32xf32>
      %c0_73 = arith.constant 0 : index
      %c0_74 = arith.constant 0 : index
      %154 = vector.load %arg4[%c0_73, %c0_74] : memref<1x32xf32, #tpu.memory_space<vmem>>, vector<1x32xf32>
      %155 = vector.broadcast %154 : vector<1x32xf32> to vector<16x32xf32>
      %156 = arith.addf %153, %155 : vector<16x32xf32>
      %cst_75 = arith.constant 0.000000e+00 : f32
      %157 = vector.broadcast %cst_75 : f32 to vector<16x32xf32>
      %158 = arith.maximumf %156, %157 : vector<16x32xf32>
      %c0_76 = arith.constant 0 : index
      %c0_77 = arith.constant 0 : index
      %159 = vector.load %arg15[%c0_76, %c0_77] : memref<16x32xf32, #tpu.memory_space<vmem>>, vector<16x32xf32>
      tpu.vector_store %arg15[%c0_76, %c0_77], %158 {strides = array<i32>} : memref<16x32xf32, #tpu.memory_space<vmem>>, vector<16x32xf32>,
    } else {
    }
    %c0 = arith.constant 0 : index
    %c0_1 = arith.constant 0 : index
    %3 = vector.load %arg15[%c0, %c0_1] : memref<16x32xf32, #tpu.memory_space<vmem>>, vector<16x32xf32>
    %4 = arith.truncf %3 : vector<16x32xf32> to vector<16x32xbf16>
    %c0_2 = arith.constant 0 : index
    %c0_3 = arith.constant 0 : index
    %c0_4 = arith.constant 0 : index
    %5 = vector.load %arg12[%c0_2, %c0_3, %c0_4] : memref<1x9x32xf32, #tpu.memory_space<vmem>>, vector<1x9x32xf32>
    %6 = vector.shape_cast %5 : vector<1x9x32xf32> to vector<9x32xf32>
    %7 = vector.extract_strided_slice %6 {offsets = [0, 0], sizes = [1, 32], strides = [1, 1]} : vector<9x32xf32> to vector<1x32xf32>
    %8 = vector.extract_strided_slice %6 {offsets = [1, 0], sizes = [1, 32], strides = [1, 1]} : vector<9x32xf32> to vector<1x32xf32>
    %9 = vector.extract_strided_slice %6 {offsets = [2, 0], sizes = [1, 32], strides = [1, 1]} : vector<9x32xf32> to vector<1x32xf32>
    %10 = vector.extract_strided_slice %6 {offsets = [3, 0], sizes = [1, 32], strides = [1, 1]} : vector<9x32xf32> to vector<1x32xf32>
    %11 = vector.extract_strided_slice %6 {offsets = [4, 0], sizes = [1, 32], strides = [1, 1]} : vector<9x32xf32> to vector<1x32xf32>
    %12 = vector.extract_strided_slice %6 {offsets = [5, 0], sizes = [1, 32], strides = [1, 1]} : vector<9x32xf32> to vector<1x32xf32>
    %13 = vector.extract_strided_slice %6 {offsets = [6, 0], sizes = [1, 32], strides = [1, 1]} : vector<9x32xf32> to vector<1x32xf32>
    %14 = vector.extract_strided_slice %6 {offsets = [7, 0], sizes = [1, 32], strides = [1, 1]} : vector<9x32xf32> to vector<1x32xf32>
    %15 = vector.extract_strided_slice %6 {offsets = [8, 0], sizes = [1, 32], strides = [1, 1]} : vector<9x32xf32> to vector<1x32xf32>
    %c0_5 = arith.constant 0 : index
    %c0_6 = arith.constant 0 : index
    %c0_7 = arith.constant 0 : index
    %16 = vector.load %arg7[%c0_5, %c0_6, %c0_7] : memref<1x32x32xbf16, #tpu.memory_space<vmem>>, vector<1x32x32xbf16>
    %17 = vector.shape_cast %16 : vector<1x32x32xbf16> to vector<32x32xbf16>
    %cst = arith.constant dense<0.000000e+00> : vector<16x32xf32>
    %18 = tpu.matmul %4, %17, %cst {dimension_numbers = #tpu.dot_dimension_numbers<[1], [0], [0], [1], [0, 0, 1, 1], [], []>} : vector<16x32xbf16>, vector<32x32xbf16>, vector<16x32xf32> -> vector<16x32xf32>
    %c0_8 = arith.constant 0 : index
    %c0_9 = arith.constant 0 : index
    %19 = vector.load %arg2[%c0_8, %c0_9] : memref<16x16xbf16, #tpu.memory_space<vmem>>, vector<16x16xbf16>
    %20 = arith.truncf %18 : vector<16x32xf32> to vector<16x32xbf16>
    %cst_10 = arith.constant dense<0.000000e+00> : vector<16x32xf32>
    %21 = tpu.matmul %19, %20, %cst_10 {dimension_numbers = #tpu.dot_dimension_numbers<[1], [0], [0], [1], [0, 0, 1, 1], [], []>} : vector<16x16xbf16>, vector<16x32xbf16>, vector<16x32xf32> -> vector<16x32xf32>
    %22 = vector.broadcast %7 : vector<1x32xf32> to vector<16x32xf32>
    %23 = arith.addf %21, %22 : vector<16x32xf32>
    %24 = arith.addf %3, %23 : vector<16x32xf32>
    %cst_11 = arith.constant dense<0.000000e+00> : vector<32xf32>
    %25 = vector.multi_reduction <add>, %24, %cst_11 [0] : vector<16x32xf32> to vector<32xf32>
    %26 = vector.shape_cast %25 : vector<32xf32> to vector<1x32xf32>
    %cst_12 = arith.constant 1.600000e+01 : f32
    %27 = vector.broadcast %cst_12 : f32 to vector<1x32xf32>
    %28 = arith.divf %26, %27 : vector<1x32xf32>
    %29 = vector.broadcast %28 : vector<1x32xf32> to vector<16x32xf32>
    %30 = arith.subf %24, %29 : vector<16x32xf32>
    %31 = arith.mulf %30, %30 : vector<16x32xf32>
    %cst_13 = arith.constant dense<0.000000e+00> : vector<32xf32>
    %32 = vector.multi_reduction <add>, %31, %cst_13 [0] : vector<16x32xf32> to vector<32xf32>
    %33 = vector.shape_cast %32 : vector<32xf32> to vector<1x32xf32>
    %cst_14 = arith.constant 1.600000e+01 : f32
    %34 = vector.broadcast %cst_14 : f32 to vector<1x32xf32>
    %35 = arith.divf %33, %34 : vector<1x32xf32>
    %36 = vector.broadcast %28 : vector<1x32xf32> to vector<16x32xf32>
    %37 = arith.subf %24, %36 : vector<16x32xf32>
    %cst_15 = arith.constant 9.99999974E-6 : f32
    %38 = vector.broadcast %cst_15 : f32 to vector<1x32xf32>
    %39 = arith.addf %35, %38 : vector<1x32xf32>
    %40 = math.rsqrt %39 : vector<1x32xf32>
    %41 = vector.broadcast %40 : vector<1x32xf32> to vector<16x32xf32>
    %42 = arith.mulf %37, %41 : vector<16x32xf32>
    %43 = vector.broadcast %8 : vector<1x32xf32> to vector<16x32xf32>
    %44 = arith.mulf %42, %43 : vector<16x32xf32>
    %45 = vector.broadcast %9 : vector<1x32xf32> to vector<16x32xf32>
    %46 = arith.addf %44, %45 : vector<16x32xf32>
    %47 = vector.shape_cast %4 : vector<16x32xbf16> to vector<1x16x32xbf16>
    %48 = vector.broadcast %47 : vector<1x16x32xbf16> to vector<4x16x32xbf16>
    %c0_16 = arith.constant 0 : index
    %c0_17 = arith.constant 0 : index
    %c0_18 = arith.constant 0 : index
    %c0_19 = arith.constant 0 : index
    %c0_20 = arith.constant 0 : index
    %49 = vector.load %arg8[%c0_16, %c0_17, %c0_18, %c0_19, %c0_20] : memref<1x3x4x32x8xbf16, #tpu.memory_space<vmem>>, vector<1x1x4x32x8xbf16>
    %50 = vector.shape_cast %49 : vector<1x1x4x32x8xbf16> to vector<4x32x8xbf16>
    "tpu.trace_start"() <{level = 10 : i32, message = "hnc,hcd->hnd"}> : () -> ()
    %cst_21 = arith.constant dense<0.000000e+00> : vector<4x16x8xf32>
    %51 = tpu.matmul %48, %50, %cst_21 {dimension_numbers = #tpu.dot_dimension_numbers<[2], [1], [1], [2], [0, 0, 0, 1, 1, 2], [0], [0]>} : vector<4x16x32xbf16>, vector<4x32x8xbf16>, vector<4x16x8xf32> -> vector<4x16x8xf32>
    "tpu.trace_stop"() : () -> ()
    %c0_22 = arith.constant 0 : index
    %c1 = arith.constant 1 : index
    %c0_23 = arith.constant 0 : index
    %c0_24 = arith.constant 0 : index
    %c0_25 = arith.constant 0 : index
    %52 = vector.load %arg8[%c0_22, %c1, %c0_23, %c0_24, %c0_25] : memref<1x3x4x32x8xbf16, #tpu.memory_space<vmem>>, vector<1x1x4x32x8xbf16>
    %53 = vector.shape_cast %52 : vector<1x1x4x32x8xbf16> to vector<4x32x8xbf16>
    "tpu.trace_start"() <{level = 10 : i32, message = "hnc,hcd->hnd"}> : () -> ()
    %cst_26 = arith.constant dense<0.000000e+00> : vector<4x16x8xf32>
    %54 = tpu.matmul %48, %53, %cst_26 {dimension_numbers = #tpu.dot_dimension_numbers<[2], [1], [1], [2], [0, 0, 0, 1, 1, 2], [0], [0]>} : vector<4x16x32xbf16>, vector<4x32x8xbf16>, vector<4x16x8xf32> -> vector<4x16x8xf32>
    "tpu.trace_stop"() : () -> ()
    %c0_27 = arith.constant 0 : index
    %c2 = arith.constant 2 : index
    %c0_28 = arith.constant 0 : index
    %c0_29 = arith.constant 0 : index
    %c0_30 = arith.constant 0 : index
    %55 = vector.load %arg8[%c0_27, %c2, %c0_28, %c0_29, %c0_30] : memref<1x3x4x32x8xbf16, #tpu.memory_space<vmem>>, vector<1x1x4x32x8xbf16>
    %56 = vector.shape_cast %55 : vector<1x1x4x32x8xbf16> to vector<4x32x8xbf16>
    "tpu.trace_start"() <{level = 10 : i32, message = "hnc,hcd->hnd"}> : () -> ()
    %cst_31 = arith.constant dense<0.000000e+00> : vector<4x16x8xf32>
    %57 = tpu.matmul %48, %56, %cst_31 {dimension_numbers = #tpu.dot_dimension_numbers<[2], [1], [1], [2], [0, 0, 0, 1, 1, 2], [0], [0]>} : vector<4x16x32xbf16>, vector<4x32x8xbf16>, vector<4x16x8xf32> -> vector<4x16x8xf32>
    "tpu.trace_stop"() : () -> ()
    %58 = arith.truncf %51 : vector<4x16x8xf32> to vector<4x16x8xbf16>
    %59 = arith.truncf %54 : vector<4x16x8xf32> to vector<4x16x8xbf16>
    "tpu.trace_start"() <{level = 10 : i32, message = "hqd,hkd->hqk"}> : () -> ()
    %cst_32 = arith.constant dense<0.000000e+00> : vector<4x16x16xf32>
    %60 = tpu.matmul %58, %59, %cst_32 {dimension_numbers = #tpu.dot_dimension_numbers<[2], [2], [1], [1], [0, 0, 0, 1, 1, 1], [0], [0]>} : vector<4x16x8xbf16>, vector<4x16x8xbf16>, vector<4x16x16xf32> -> vector<4x16x16xf32>
    "tpu.trace_stop"() : () -> ()
    %cst_33 = arith.constant 0.353553385 : f32
    %61 = vector.broadcast %cst_33 : f32 to vector<4x16x16xf32>
    %62 = arith.mulf %60, %61 : vector<4x16x16xf32>
    %cst_34 = arith.constant dense<0xFF800000> : vector<4x16xf32>
    %63 = vector.multi_reduction <maximumf>, %62, %cst_34 [2] : vector<4x16x16xf32> to vector<4x16xf32>
    %64 = vector.shape_cast %63 : vector<4x16xf32> to vector<4x16x1xf32>
    %65 = vector.broadcast %64 : vector<4x16x1xf32> to vector<4x16x16xf32>
    %66 = arith.subf %62, %65 : vector<4x16x16xf32>
    %67 = math.exp %66 : vector<4x16x16xf32>
    %cst_35 = arith.constant dense<0.000000e+00> : vector<4x16xf32>
    %68 = vector.multi_reduction <add>, %67, %cst_35 [2] : vector<4x16x16xf32> to vector<4x16xf32>
    %69 = vector.shape_cast %68 : vector<4x16xf32> to vector<4x16x1xf32>
    %70 = tpu.reciprocal %69 {approx = true} : vector<4x16x1xf32> -> vector<4x16x1xf32>
    %71 = vector.broadcast %70 : vector<4x16x1xf32> to vector<4x16x16xf32>
    %72 = arith.mulf %67, %71 : vector<4x16x16xf32>
    %73 = arith.truncf %72 : vector<4x16x16xf32> to vector<4x16x16xbf16>
    %74 = arith.truncf %57 : vector<4x16x8xf32> to vector<4x16x8xbf16>
    "tpu.trace_start"() <{level = 10 : i32, message = "hqk,hkd->hqd"}> : () -> ()
    %cst_36 = arith.constant dense<0.000000e+00> : vector<4x16x8xf32>
    %75 = tpu.matmul %73, %74, %cst_36 {dimension_numbers = #tpu.dot_dimension_numbers<[2], [1], [1], [2], [0, 0, 0, 1, 1, 2], [0], [0]>} : vector<4x16x16xbf16>, vector<4x16x8xbf16>, vector<4x16x8xf32> -> vector<4x16x8xf32>
    "tpu.trace_stop"() : () -> ()
    %76 = arith.truncf %75 : vector<4x16x8xf32> to vector<4x16x8xbf16>
    %c0_37 = arith.constant 0 : index
    %c0_38 = arith.constant 0 : index
    %c0_39 = arith.constant 0 : index
    %c0_40 = arith.constant 0 : index
    %77 = vector.load %arg9[%c0_37, %c0_38, %c0_39, %c0_40] : memref<1x4x8x32xbf16, #tpu.memory_space<vmem>>, vector<1x4x8x32xbf16>
    %78 = vector.shape_cast %77 : vector<1x4x8x32xbf16> to vector<4x8x32xbf16>
    "tpu.trace_start"() <{level = 10 : i32, message = "hnd,hdk->hnk"}> : () -> ()
    %cst_41 = arith.constant dense<0.000000e+00> : vector<4x16x32xf32>
    %79 = tpu.matmul %76, %78, %cst_41 {dimension_numbers = #tpu.dot_dimension_numbers<[2], [1], [1], [2], [0, 0, 0, 1, 1, 2], [0], [0]>} : vector<4x16x8xbf16>, vector<4x8x32xbf16>, vector<4x16x32xf32> -> vector<4x16x32xf32>
    "tpu.trace_stop"() : () -> ()
    %cst_42 = arith.constant dense<0.000000e+00> : vector<16x32xf32>
    %80 = vector.multi_reduction <add>, %79, %cst_42 [0] : vector<4x16x32xf32> to vector<16x32xf32>
    %81 = vector.broadcast %10 : vector<1x32xf32> to vector<16x32xf32>
    %82 = arith.addf %80, %81 : vector<16x32xf32>
    %83 = arith.addf %3, %82 : vector<16x32xf32>
    %cst_43 = arith.constant dense<0.000000e+00> : vector<32xf32>
    %84 = vector.multi_reduction <add>, %83, %cst_43 [0] : vector<16x32xf32> to vector<32xf32>
    %85 = vector.shape_cast %84 : vector<32xf32> to vector<1x32xf32>
    %cst_44 = arith.constant 1.600000e+01 : f32
    %86 = vector.broadcast %cst_44 : f32 to vector<1x32xf32>
    %87 = arith.divf %85, %86 : vector<1x32xf32>
    %88 = vector.broadcast %87 : vector<1x32xf32> to vector<16x32xf32>
    %89 = arith.subf %83, %88 : vector<16x32xf32>
    %90 = arith.mulf %89, %89 : vector<16x32xf32>
    %cst_45 = arith.constant dense<0.000000e+00> : vector<32xf32>
    %91 = vector.multi_reduction <add>, %90, %cst_45 [0] : vector<16x32xf32> to vector<32xf32>
    %92 = vector.shape_cast %91 : vector<32xf32> to vector<1x32xf32>
    %cst_46 = arith.constant 1.600000e+01 : f32
    %93 = vector.broadcast %cst_46 : f32 to vector<1x32xf32>
    %94 = arith.divf %92, %93 : vector<1x32xf32>
    %95 = vector.broadcast %87 : vector<1x32xf32> to vector<16x32xf32>
    %96 = arith.subf %83, %95 : vector<16x32xf32>
    %cst_47 = arith.constant 9.99999974E-6 : f32
    %97 = vector.broadcast %cst_47 : f32 to vector<1x32xf32>
    %98 = arith.addf %94, %97 : vector<1x32xf32>
    %99 = math.rsqrt %98 : vector<1x32xf32>
    %100 = vector.broadcast %99 : vector<1x32xf32> to vector<16x32xf32>
    %101 = arith.mulf %96, %100 : vector<16x32xf32>
    %102 = vector.broadcast %11 : vector<1x32xf32> to vector<16x32xf32>
    %103 = arith.mulf %101, %102 : vector<16x32xf32>
    %104 = vector.broadcast %12 : vector<1x32xf32> to vector<16x32xf32>
    %105 = arith.addf %103, %104 : vector<16x32xf32>
    %106 = arith.addf %46, %105 : vector<16x32xf32>
    %107 = arith.truncf %106 : vector<16x32xf32> to vector<16x32xbf16>
    %c0_48 = arith.constant 0 : index
    %c0_49 = arith.constant 0 : index
    %c0_50 = arith.constant 0 : index
    %108 = vector.load %arg10[%c0_48, %c0_49, %c0_50] : memref<1x32x64xbf16, #tpu.memory_space<vmem>>, vector<1x32x64xbf16>
    %109 = vector.shape_cast %108 : vector<1x32x64xbf16> to vector<32x64xbf16>
    %cst_51 = arith.constant dense<0.000000e+00> : vector<16x64xf32>
    %110 = tpu.matmul %107, %109, %cst_51 {dimension_numbers = #tpu.dot_dimension_numbers<[1], [0], [0], [1], [0, 0, 1, 1], [], []>} : vector<16x32xbf16>, vector<32x64xbf16>, vector<16x64xf32> -> vector<16x64xf32>
    %c0_52 = arith.constant 0 : index
    %c0_53 = arith.constant 0 : index
    %c0_54 = arith.constant 0 : index
    %111 = vector.load %arg13[%c0_52, %c0_53, %c0_54] : memref<1x1x64xf32, #tpu.memory_space<vmem>>, vector<1x1x64xf32>
    %112 = vector.shape_cast %111 : vector<1x1x64xf32> to vector<1x64xf32>
    %113 = vector.broadcast %112 : vector<1x64xf32> to vector<16x64xf32>
    %114 = arith.addf %110, %113 : vector<16x64xf32>
    %cst_55 = arith.constant 0.000000e+00 : f32
    %115 = vector.broadcast %cst_55 : f32 to vector<16x64xf32>
    %116 = arith.maximumf %114, %115 : vector<16x64xf32>
    %117 = arith.truncf %116 : vector<16x64xf32> to vector<16x64xbf16>
    %c0_56 = arith.constant 0 : index
    %c0_57 = arith.constant 0 : index
    %c0_58 = arith.constant 0 : index
    %118 = vector.load %arg11[%c0_56, %c0_57, %c0_58] : memref<1x64x32xbf16, #tpu.memory_space<vmem>>, vector<1x64x32xbf16>
    %119 = vector.shape_cast %118 : vector<1x64x32xbf16> to vector<64x32xbf16>
    %cst_59 = arith.constant dense<0.000000e+00> : vector<16x32xf32>
    %120 = tpu.matmul %117, %119, %cst_59 {dimension_numbers = #tpu.dot_dimension_numbers<[1], [0], [0], [1], [0, 0, 1, 1], [], []>} : vector<16x64xbf16>, vector<64x32xbf16>, vector<16x32xf32> -> vector<16x32xf32>
    %121 = vector.broadcast %13 : vector<1x32xf32> to vector<16x32xf32>
    %122 = arith.addf %120, %121 : vector<16x32xf32>
    %123 = arith.addf %106, %122 : vector<16x32xf32>
    %cst_60 = arith.constant dense<0.000000e+00> : vector<32xf32>
    %124 = vector.multi_reduction <add>, %123, %cst_60 [0] : vector<16x32xf32> to vector<32xf32>
    %125 = vector.shape_cast %124 : vector<32xf32> to vector<1x32xf32>
    %cst_61 = arith.constant 1.600000e+01 : f32
    %126 = vector.broadcast %cst_61 : f32 to vector<1x32xf32>
    %127 = arith.divf %125, %126 : vector<1x32xf32>
    %128 = vector.broadcast %127 : vector<1x32xf32> to vector<16x32xf32>
    %129 = arith.subf %123, %128 : vector<16x32xf32>
    %130 = arith.mulf %129, %129 : vector<16x32xf32>
    %cst_62 = arith.constant dense<0.000000e+00> : vector<32xf32>
    %131 = vector.multi_reduction <add>, %130, %cst_62 [0] : vector<16x32xf32> to vector<32xf32>
    %132 = vector.shape_cast %131 : vector<32xf32> to vector<1x32xf32>
    %cst_63 = arith.constant 1.600000e+01 : f32
    %133 = vector.broadcast %cst_63 : f32 to vector<1x32xf32>
    %134 = arith.divf %132, %133 : vector<1x32xf32>
    %135 = vector.broadcast %127 : vector<1x32xf32> to vector<16x32xf32>
    %136 = arith.subf %123, %135 : vector<16x32xf32>
    %cst_64 = arith.constant 9.99999974E-6 : f32
    %137 = vector.broadcast %cst_64 : f32 to vector<1x32xf32>
    %138 = arith.addf %134, %137 : vector<1x32xf32>
    %139 = math.rsqrt %138 : vector<1x32xf32>
    %140 = vector.broadcast %139 : vector<1x32xf32> to vector<16x32xf32>
    %141 = arith.mulf %136, %140 : vector<16x32xf32>
    %142 = vector.broadcast %14 : vector<1x32xf32> to vector<16x32xf32>
    %143 = arith.mulf %141, %142 : vector<16x32xf32>
    %144 = vector.broadcast %15 : vector<1x32xf32> to vector<16x32xf32>
    %145 = arith.addf %143, %144 : vector<16x32xf32>
    %c0_65 = arith.constant 0 : index
    %c0_66 = arith.constant 0 : index
    %146 = vector.load %arg15[%c0_65, %c0_66] : memref<16x32xf32, #tpu.memory_space<vmem>>, vector<16x32xf32>
    tpu.vector_store %arg15[%c0_65, %c0_66], %145 {strides = array<i32>} : memref<16x32xf32, #tpu.memory_space<vmem>>, vector<16x32xf32>,
    %c1_i32 = arith.constant 1 : i32
    %147 = arith.cmpi eq, %arg0, %c1_i32 : i32
    %148 = arith.extui %147 : i1 to i32
    %c0_i32_67 = arith.constant 0 : i32
    %149 = arith.cmpi ne, %148, %c0_i32_67 : i32
    scf.if %149 {
      %150 = arith.truncf %145 : vector<16x32xf32> to vector<16x32xbf16>
      %c0_68 = arith.constant 0 : index
      %c0_69 = arith.constant 0 : index
      %151 = vector.load %arg5[%c0_68, %c0_69] : memref<32x4xbf16, #tpu.memory_space<vmem>>, vector<32x4xbf16>
      %cst_70 = arith.constant dense<0.000000e+00> : vector<16x4xf32>
      %152 = tpu.matmul %150, %151, %cst_70 {dimension_numbers = #tpu.dot_dimension_numbers<[1], [0], [0], [1], [0, 0, 1, 1], [], []>} : vector<16x32xbf16>, vector<32x4xbf16>, vector<16x4xf32> -> vector<16x4xf32>
      %c0_71 = arith.constant 0 : index
      %c0_72 = arith.constant 0 : index
      %153 = vector.load %arg6[%c0_71, %c0_72] : memref<1x4xf32, #tpu.memory_space<vmem>>, vector<1x4xf32>
      %154 = vector.broadcast %153 : vector<1x4xf32> to vector<16x4xf32>
      %155 = arith.addf %152, %154 : vector<16x4xf32>
      %c0_73 = arith.constant 0 : index
      %c0_74 = arith.constant 0 : index
      %156 = vector.load %arg14[%c0_73, %c0_74] : memref<16x4xf32, #tpu.memory_space<vmem>>, vector<16x4xf32>
      tpu.vector_store %arg14[%c0_73, %c0_74], %155 {strides = array<i32>} : memref<16x4xf32, #tpu.memory_space<vmem>>, vector<16x4xf32>,
    } else {
    }
    return
  }
  func.func @transform_0(%arg0: i32) -> (i32, i32) {
    %c0_i32 = arith.constant 0 : i32
    %c0_i32_0 = arith.constant 0 : i32
    %c0_i32_1 = arith.constant 0 : i32
    return %c0_i32, %c0_i32_0 : i32, i32
  }
  func.func @transform_1(%arg0: i32) -> (i32, i32) {
    %c0_i32 = arith.constant 0 : i32
    %c0_i32_0 = arith.constant 0 : i32
    %c0_i32_1 = arith.constant 0 : i32
    return %c0_i32, %c0_i32_0 : i32, i32
  }
  func.func @transform_2(%arg0: i32) -> (i32, i32) {
    %c0_i32 = arith.constant 0 : i32
    %c0_i32_0 = arith.constant 0 : i32
    %c0_i32_1 = arith.constant 0 : i32
    return %c0_i32, %c0_i32_0 : i32, i32
  }
  func.func @transform_3(%arg0: i32) -> (i32, i32) {
    %c0_i32 = arith.constant 0 : i32
    %c0_i32_0 = arith.constant 0 : i32
    %c0_i32_1 = arith.constant 0 : i32
    return %c0_i32, %c0_i32_0 : i32, i32
  }
  func.func @transform_4(%arg0: i32) -> (i32, i32) {
    %c0_i32 = arith.constant 0 : i32
    %c0_i32_0 = arith.constant 0 : i32
    %c0_i32_1 = arith.constant 0 : i32
    return %c0_i32, %c0_i32_0 : i32, i32
  }
  func.func @transform_5(%arg0: i32) -> (i32, i32) {
    %c0_i32 = arith.constant 0 : i32
    %c0_i32_0 = arith.constant 0 : i32
    %c0_i32_1 = arith.constant 0 : i32
    return %c0_i32, %c0_i32_0 : i32, i32
  }
  func.func @transform_6(%arg0: i32) -> (i32, i32, i32) {
    %c0_i32 = arith.constant 0 : i32
    %c0_i32_0 = arith.constant 0 : i32
    %c0_i32_1 = arith.constant 0 : i32
    return %arg0, %c0_i32, %c0_i32_0 : i32, i32, i32
  }
  func.func @transform_7(%arg0: i32) -> (i32, i32, i32, i32, i32) {
    %c0_i32 = arith.constant 0 : i32
    %c0_i32_0 = arith.constant 0 : i32
    %c0_i32_1 = arith.constant 0 : i32
    %c0_i32_2 = arith.constant 0 : i32
    %c0_i32_3 = arith.constant 0 : i32
    return %arg0, %c0_i32, %c0_i32_0, %c0_i32_1, %c0_i32_2 : i32, i32, i32, i32, i32
  }
  func.func @transform_8(%arg0: i32) -> (i32, i32, i32, i32) {
    %c0_i32 = arith.constant 0 : i32
    %c0_i32_0 = arith.constant 0 : i32
    %c0_i32_1 = arith.constant 0 : i32
    %c0_i32_2 = arith.constant 0 : i32
    return %arg0, %c0_i32, %c0_i32_0, %c0_i32_1 : i32, i32, i32, i32
  }
  func.func @transform_9(%arg0: i32) -> (i32, i32, i32) {
    %c0_i32 = arith.constant 0 : i32
    %c0_i32_0 = arith.constant 0 : i32
    %c0_i32_1 = arith.constant 0 : i32
    return %arg0, %c0_i32, %c0_i32_0 : i32, i32, i32
  }
  func.func @transform_10(%arg0: i32) -> (i32, i32, i32) {
    %c0_i32 = arith.constant 0 : i32
    %c0_i32_0 = arith.constant 0 : i32
    %c0_i32_1 = arith.constant 0 : i32
    return %arg0, %c0_i32, %c0_i32_0 : i32, i32, i32
  }
  func.func @transform_11(%arg0: i32) -> (i32, i32, i32) {
    %c0_i32 = arith.constant 0 : i32
    %c0_i32_0 = arith.constant 0 : i32
    %c0_i32_1 = arith.constant 0 : i32
    return %arg0, %c0_i32, %c0_i32_0 : i32, i32, i32
  }
  func.func @transform_12(%arg0: i32) -> (i32, i32, i32) {
    %c0_i32 = arith.constant 0 : i32
    %c0_i32_0 = arith.constant 0 : i32
    %c0_i32_1 = arith.constant 0 : i32
    return %arg0, %c0_i32, %c0_i32_0 : i32, i32, i32
  }
  func.func @transform_13(%arg0: i32) -> (i32, i32) {
    %c0_i32 = arith.constant 0 : i32
    %c0_i32_0 = arith.constant 0 : i32
    %c0_i32_1 = arith.constant 0 : i32
    return %c0_i32, %c0_i32_0 : i32, i32
  }
}

</mosaic_0001>

<llo_original>
// kernel: gps_model.1
$region0: #{gps_model.1}
  #allocation0 [shape = 'u32[]', space=smem, size = 0x4, offset = 0x4, fixed_abs, tag = 'smem constant byte address 0x4 - core index']
  #allocation1 [shape = 'u32[144,128]{1,0:T(1,128)}', space=vmem, size = 0x12000, scoped, tag = 'internal scratch']
  #allocation2 [shape = 'f32[16,32]{1,0:T(8,128)}', space=vmem, size = 0x2000, scoped, tag = 'scratch operand']
  %s0 = inlined_call_operand.vmem [shape: f32[16,8], index: 0, kind: input, shape index: {}]
  %s1 = inlined_call_operand.vmem [shape: bf16[16,16], index: 1, kind: input, shape index: {}]
  %s2 = inlined_call_operand.vmem [shape: bf16[8,32], index: 2, kind: input, shape index: {}]
  %s3 = inlined_call_operand.vmem [shape: f32[1,32], index: 3, kind: input, shape index: {}]
  %s4 = inlined_call_operand.vmem [shape: bf16[32,4], index: 4, kind: input, shape index: {}]
  %s5 = inlined_call_operand.vmem [shape: f32[1,4], index: 5, kind: input, shape index: {}]
  %s6 = inlined_call_operand.vmem [shape: bf16[2,32,32], index: 6, kind: input, shape index: {}]
  %s7 = inlined_call_operand.vmem [shape: bf16[2,3,4,32,8], index: 7, kind: input, shape index: {}]
  %s8 = inlined_call_operand.vmem [shape: bf16[2,4,8,32], index: 8, kind: input, shape index: {}]
  %s9 = inlined_call_operand.vmem [shape: bf16[2,32,64], index: 9, kind: input, shape index: {}]
  %s10 = inlined_call_operand.vmem [shape: bf16[2,64,32], index: 10, kind: input, shape index: {}]
  %s11 = inlined_call_operand.vmem [shape: f32[2,9,32], index: 11, kind: input, shape index: {}]
  %s12 = inlined_call_operand.vmem [shape: f32[2,1,64], index: 12, kind: input, shape index: {}]
  %s13 = inlined_call_operand.vmem [shape: f32[16,4], index: 13, kind: output, shape index: {}]
  %s14 = sld [smem:[#allocation0]]
  $region93: #{gps_model.1} parent=0
    _
  %s16 = ssub.s32 1, %s14
  %s17 = scalar_select 0, %s16, %s14
  loop: start=0, step=1, limit=4
  $region2: #{gps_model.1} parent=0 // loop_pre_header
    _
  $region3: #{gps_model.1} parent=0 // loop_header
    %s19 = sphi 0, %s23
    %p20 = scmp.ge.s32.totalorder %s19, 4
    %s27 = sphi 0, %s27
    %s29 = sphi 0, %s27
    %s30 = sphi 0, %s29
    %s44 = sphi 0, %s30
    %s48 = sphi 0, %s48
    %s50 = sphi 0, %s48
    %s51 = sphi 0, %s50
    %s65 = sphi 0, %s51
    %s69 = sphi 0, %s69
    %s71 = sphi 0, %s69
    %s72 = sphi 0, %s71
    %s86 = sphi 0, %s72
    %s90 = sphi 0, %s90
    %s92 = sphi 0, %s90
    %s93 = sphi 0, %s92
    %s107 = sphi 0, %s93
    %s111 = sphi 0, %s111
    %s113 = sphi 0, %s111
    %s114 = sphi 0, %s113
    %s128 = sphi 0, %s114
    %s132 = sphi 0, %s132
    %s134 = sphi 0, %s132
    %s135 = sphi 0, %s134
    %s149 = sphi 0, %s135
    %s155 = sphi 0, %s157
    %s158 = sphi 0, %s155
    %s159 = sphi 0, %s158
    %s175 = sphi 0, %s159
    %s181 = sphi 0, %s183
    %s184 = sphi 0, %s181
    %s185 = sphi 0, %s184
    %s201 = sphi 0, %s185
    %s207 = sphi 0, %s209
    %s210 = sphi 0, %s207
    %s211 = sphi 0, %s210
    %s227 = sphi 0, %s211
    %s233 = sphi 0, %s235
    %s236 = sphi 0, %s233
    %s237 = sphi 0, %s236
    %s253 = sphi 0, %s237
    %s259 = sphi 0, %s261
    %s262 = sphi 0, %s259
    %s263 = sphi 0, %s262
    %s279 = sphi 0, %s263
    %s285 = sphi 0, %s287
    %s288 = sphi 0, %s285
    %s289 = sphi 0, %s288
    %s305 = sphi 0, %s289
    %s311 = sphi 0, %s313
    %s314 = sphi 0, %s311
    %s315 = sphi 0, %s314
    %s331 = sphi 0, %s315
    %s335 = sphi 0, %s335
    %s337 = sphi 0, %s335
    %s338 = sphi 0, %s337
    %s352 = sphi 0, %s338
  $region4: #{gps_model.1} parent=0 // loop_header_branch
    %22 = sbr.rel (%p20) target = $region8
  $region5: #{gps_model.1} parent=0 // loop_body
    %s24 = ssub.s32 %s19, 1
    %s25 = ssub.s32 %s19, 2
    %s26 = sadd.s32 %s19, 1
    %s28 = sadd.s32 %s27, 1
    %p31 = scmp.eq.s32.totalorder %s19, 1
    %p32 = scmp.ne.s32.totalorder %s27, %s29
    %p33 = scmp.eq.s32.totalorder %s19, 0
    %p34 = por %p32, %p33
    %p35 = scmp.ne.s32.totalorder %s27, %s29
    %p36 = scmp.eq.s32.totalorder %s24, 1
    %p37 = por %p35, %p36
    %p38 = scmp.ne.s32.totalorder %s29, %s30
    %p39 = scmp.eq.s32.totalorder %s24, 0
    %p40 = por %p38, %p39
    %p41 = scmp.ne.s32.totalorder %s29, %s30
    %p42 = scmp.eq.s32.totalorder %s25, 1
    %p43 = por %p41, %p42
    %p45 = scmp.ne.s32.totalorder %s30, %s44
    %p46 = scmp.eq.s32.totalorder %s25, 0
    %p47 = por %p45, %p46
    %s49 = sadd.s32 %s48, 1
    %p52 = scmp.eq.s32.totalorder %s19, 1
    %p53 = scmp.ne.s32.totalorder %s48, %s50
    %p54 = scmp.eq.s32.totalorder %s19, 0
    %p55 = por %p53, %p54
    %p56 = scmp.ne.s32.totalorder %s48, %s50
    %p57 = scmp.eq.s32.totalorder %s24, 1
    %p58 = por %p56, %p57
    %p59 = scmp.ne.s32.totalorder %s50, %s51
    %p60 = scmp.eq.s32.totalorder %s24, 0
    %p61 = por %p59, %p60
    %p62 = scmp.ne.s32.totalorder %s50, %s51
    %p63 = scmp.eq.s32.totalorder %s25, 1
    %p64 = por %p62, %p63
    %p66 = scmp.ne.s32.totalorder %s51, %s65
    %p67 = scmp.eq.s32.totalorder %s25, 0
    %p68 = por %p66, %p67
    %s70 = sadd.s32 %s69, 1
    %p73 = scmp.eq.s32.totalorder %s19, 1
    %p74 = scmp.ne.s32.totalorder %s69, %s71
    %p75 = scmp.eq.s32.totalorder %s19, 0
    %p76 = por %p74, %p75
    %p77 = scmp.ne.s32.totalorder %s69, %s71
    %p78 = scmp.eq.s32.totalorder %s24, 1
    %p79 = por %p77, %p78
    %p80 = scmp.ne.s32.totalorder %s71, %s72
    %p81 = scmp.eq.s32.totalorder %s24, 0
    %p82 = por %p80, %p81
    %p83 = scmp.ne.s32.totalorder %s71, %s72
    %p84 = scmp.eq.s32.totalorder %s25, 1
    %p85 = por %p83, %p84
    %p87 = scmp.ne.s32.totalorder %s72, %s86
    %p88 = scmp.eq.s32.totalorder %s25, 0
    %p89 = por %p87, %p88
    %s91 = sadd.s32 %s90, 1
    %p94 = scmp.eq.s32.totalorder %s19, 1
    %p95 = scmp.ne.s32.totalorder %s90, %s92
    %p96 = scmp.eq.s32.totalorder %s19, 0
    %p97 = por %p95, %p96
    %p98 = scmp.ne.s32.totalorder %s90, %s92
    %p99 = scmp.eq.s32.totalorder %s24, 1
    %p100 = por %p98, %p99
    %p101 = scmp.ne.s32.totalorder %s92, %s93
    %p102 = scmp.eq.s32.totalorder %s24, 0
    %p103 = por %p101, %p102
    %p104 = scmp.ne.s32.totalorder %s92, %s93
    %p105 = scmp.eq.s32.totalorder %s25, 1
    %p106 = por %p104, %p105
    %p108 = scmp.ne.s32.totalorder %s93, %s107
    %p109 = scmp.eq.s32.totalorder %s25, 0
    %p110 = por %p108, %p109
    %s112 = sadd.s32 %s111, 1
    %p115 = scmp.eq.s32.totalorder %s19, 1
    %p116 = scmp.ne.s32.totalorder %s111, %s113
    %p117 = scmp.eq.s32.totalorder %s19, 0
    %p118 = por %p116, %p117
    %p119 = scmp.ne.s32.totalorder %s111, %s113
    %p120 = scmp.eq.s32.totalorder %s24, 1
    %p121 = por %p119, %p120
    %p122 = scmp.ne.s32.totalorder %s113, %s114
    %p123 = scmp.eq.s32.totalorder %s24, 0
    %p124 = por %p122, %p123
    %p125 = scmp.ne.s32.totalorder %s113, %s114
    %p126 = scmp.eq.s32.totalorder %s25, 1
    %p127 = por %p125, %p126
    %p129 = scmp.ne.s32.totalorder %s114, %s128
    %p130 = scmp.eq.s32.totalorder %s25, 0
    %p131 = por %p129, %p130
    %s133 = sadd.s32 %s132, 1
    %p136 = scmp.eq.s32.totalorder %s19, 1
    %p137 = scmp.ne.s32.totalorder %s132, %s134
    %p138 = scmp.eq.s32.totalorder %s19, 0
    %p139 = por %p137, %p138
    %p140 = scmp.ne.s32.totalorder %s132, %s134
    %p141 = scmp.eq.s32.totalorder %s24, 1
    %p142 = por %p140, %p141
    %p143 = scmp.ne.s32.totalorder %s134, %s135
    %p144 = scmp.eq.s32.totalorder %s24, 0
    %p145 = por %p143, %p144
    %p146 = scmp.ne.s32.totalorder %s134, %s135
    %p147 = scmp.eq.s32.totalorder %s25, 1
    %p148 = por %p146, %p147
    %p150 = scmp.ne.s32.totalorder %s135, %s149
    %p151 = scmp.eq.s32.totalorder %s25, 0
    %p152 = por %p150, %p151
    %s153 = ssub.s32 %s19, %s26
    %p154 = scmp.eq.s32.totalorder %s153, 0
    %s156 = sadd.s32 %s155, 1
    %s157 = scalar_select %p154, %s155, %s156
    %p160 = pneg %p154
    %p161 = scmp.eq.s32.totalorder %s19, 1
    %p162 = por %p160, %p161
    %p163 = scmp.ne.s32.totalorder %s155, %s158
    %p164 = scmp.eq.s32.totalorder %s19, 0
    %p165 = por %p163, %p164
    %p166 = scmp.ne.s32.totalorder %s155, %s158
    %p167 = scmp.eq.s32.totalorder %s24, 1
    %p168 = por %p166, %p167
    %p169 = scmp.ne.s32.totalorder %s158, %s159
    %p170 = scmp.eq.s32.totalorder %s24, 0
    %p171 = por %p169, %p170
    %p172 = scmp.ne.s32.totalorder %s158, %s159
    %p173 = scmp.eq.s32.totalorder %s25, 1
    %p174 = por %p172, %p173
    %p176 = scmp.ne.s32.totalorder %s159, %s175
    %p177 = scmp.eq.s32.totalorder %s25, 0
    %p178 = por %p176, %p177
    %s179 = ssub.s32 %s19, %s26
    %p180 = scmp.eq.s32.totalorder %s179, 0
    %s182 = sadd.s32 %s181, 1
    %s183 = scalar_select %p180, %s181, %s182
    %p186 = pneg %p180
    %p187 = scmp.eq.s32.totalorder %s19, 1
    %p188 = por %p186, %p187
    %p189 = scmp.ne.s32.totalorder %s181, %s184
    %p190 = scmp.eq.s32.totalorder %s19, 0
    %p191 = por %p189, %p190
    %p192 = scmp.ne.s32.totalorder %s181, %s184
    %p193 = scmp.eq.s32.totalorder %s24, 1
    %p194 = por %p192, %p193
    %p195 = scmp.ne.s32.totalorder %s184, %s185
    %p196 = scmp.eq.s32.totalorder %s24, 0
    %p197 = por %p195, %p196
    %p198 = scmp.ne.s32.totalorder %s184, %s185
    %p199 = scmp.eq.s32.totalorder %s25, 1
    %p200 = por %p198, %p199
    %p202 = scmp.ne.s32.totalorder %s185, %s201
    %p203 = scmp.eq.s32.totalorder %s25, 0
    %p204 = por %p202, %p203
    %s205 = ssub.s32 %s19, %s26
    %p206 = scmp.eq.s32.totalorder %s205, 0
    %s208 = sadd.s32 %s207, 1
    %s209 = scalar_select %p206, %s207, %s208
    %p212 = pneg %p206
    %p213 = scmp.eq.s32.totalorder %s19, 1
    %p214 = por %p212, %p213
    %p215 = scmp.ne.s32.totalorder %s207, %s210
    %p216 = scmp.eq.s32.totalorder %s19, 0
    %p217 = por %p215, %p216
    %p218 = scmp.ne.s32.totalorder %s207, %s210
    %p219 = scmp.eq.s32.totalorder %s24, 1
    %p220 = por %p218, %p219
    %p221 = scmp.ne.s32.totalorder %s210, %s211
    %p222 = scmp.eq.s32.totalorder %s24, 0
    %p223 = por %p221, %p222
    %p224 = scmp.ne.s32.totalorder %s210, %s211
    %p225 = scmp.eq.s32.totalorder %s25, 1
    %p226 = por %p224, %p225
    %p228 = scmp.ne.s32.totalorder %s211, %s227
    %p229 = scmp.eq.s32.totalorder %s25, 0
    %p230 = por %p228, %p229
    %s231 = ssub.s32 %s19, %s26
    %p232 = scmp.eq.s32.totalorder %s231, 0
    %s234 = sadd.s32 %s233, 1
    %s235 = scalar_select %p232, %s233, %s234
    %p238 = pneg %p232
    %p239 = scmp.eq.s32.totalorder %s19, 1
    %p240 = por %p238, %p239
    %p241 = scmp.ne.s32.totalorder %s233, %s236
    %p242 = scmp.eq.s32.totalorder %s19, 0
    %p243 = por %p241, %p242
    %p244 = scmp.ne.s32.totalorder %s233, %s236
    %p245 = scmp.eq.s32.totalorder %s24, 1
    %p246 = por %p244, %p245
    %p247 = scmp.ne.s32.totalorder %s236, %s237
    %p248 = scmp.eq.s32.totalorder %s24, 0
    %p249 = por %p247, %p248
    %p250 = scmp.ne.s32.totalorder %s236, %s237
    %p251 = scmp.eq.s32.totalorder %s25, 1
    %p252 = por %p250, %p251
    %p254 = scmp.ne.s32.totalorder %s237, %s253
    %p255 = scmp.eq.s32.totalorder %s25, 0
    %p256 = por %p254, %p255
    %s257 = ssub.s32 %s19, %s26
    %p258 = scmp.eq.s32.totalorder %s257, 0
    %s260 = sadd.s32 %s259, 1
    %s261 = scalar_select %p258, %s259, %s260
    %p264 = pneg %p258
    %p265 = scmp.eq.s32.totalorder %s19, 1
    %p266 = por %p264, %p265
    %p267 = scmp.ne.s32.totalorder %s259, %s262
    %p268 = scmp.eq.s32.totalorder %s19, 0
    %p269 = por %p267, %p268
    %p270 = scmp.ne.s32.totalorder %s259, %s262
    %p271 = scmp.eq.s32.totalorder %s24, 1
    %p272 = por %p270, %p271
    %p273 = scmp.ne.s32.totalorder %s262, %s263
    %p274 = scmp.eq.s32.totalorder %s24, 0
    %p275 = por %p273, %p274
    %p276 = scmp.ne.s32.totalorder %s262, %s263
    %p277 = scmp.eq.s32.totalorder %s25, 1
    %p278 = por %p276, %p277
    %p280 = scmp.ne.s32.totalorder %s263, %s279
    %p281 = scmp.eq.s32.totalorder %s25, 0
    %p282 = por %p280, %p281
    %s283 = ssub.s32 %s19, %s26
    %p284 = scmp.eq.s32.totalorder %s283, 0
    %s286 = sadd.s32 %s285, 1
    %s287 = scalar_select %p284, %s285, %s286
    %p290 = pneg %p284
    %p291 = scmp.eq.s32.totalorder %s19, 1
    %p292 = por %p290, %p291
    %p293 = scmp.ne.s32.totalorder %s285, %s288
    %p294 = scmp.eq.s32.totalorder %s19, 0
    %p295 = por %p293, %p294
    %p296 = scmp.ne.s32.totalorder %s285, %s288
    %p297 = scmp.eq.s32.totalorder %s24, 1
    %p298 = por %p296, %p297
    %p299 = scmp.ne.s32.totalorder %s288, %s289
    %p300 = scmp.eq.s32.totalorder %s24, 0
    %p301 = por %p299, %p300
    %p302 = scmp.ne.s32.totalorder %s288, %s289
    %p303 = scmp.eq.s32.totalorder %s25, 1
    %p304 = por %p302, %p303
    %p306 = scmp.ne.s32.totalorder %s289, %s305
    %p307 = scmp.eq.s32.totalorder %s25, 0
    %p308 = por %p306, %p307
    %s309 = ssub.s32 %s19, %s26
    %p310 = scmp.eq.s32.totalorder %s309, 0
    %s312 = sadd.s32 %s311, 1
    %s313 = scalar_select %p310, %s311, %s312
    %p316 = pneg %p310
    %p317 = scmp.eq.s32.totalorder %s19, 1
    %p318 = por %p316, %p317
    %p319 = scmp.ne.s32.totalorder %s311, %s314
    %p320 = scmp.eq.s32.totalorder %s19, 0
    %p321 = por %p319, %p320
    %p322 = scmp.ne.s32.totalorder %s311, %s314
    %p323 = scmp.eq.s32.totalorder %s24, 1
    %p324 = por %p322, %p323
    %p325 = scmp.ne.s32.totalorder %s314, %s315
    %p326 = scmp.eq.s32.totalorder %s24, 0
    %p327 = por %p325, %p326
    %p328 = scmp.ne.s32.totalorder %s314, %s315
    %p329 = scmp.eq.s32.totalorder %s25, 1
    %p330 = por %p328, %p329
    %p332 = scmp.ne.s32.totalorder %s315, %s331
    %p333 = scmp.eq.s32.totalorder %s25, 0
    %p334 = por %p332, %p333
    %s336 = sadd.s32 %s335, 1
    %p339 = scmp.eq.s32.totalorder %s19, 1
    %p340 = scmp.ne.s32.totalorder %s335, %s337
    %p341 = scmp.eq.s32.totalorder %s19, 0
    %p342 = por %p340, %p341
    %p343 = scmp.ne.s32.totalorder %s335, %s337
    %p344 = scmp.eq.s32.totalorder %s24, 1
    %p345 = por %p343, %p344
    %p346 = scmp.ne.s32.totalorder %s337, %s338
    %p347 = scmp.eq.s32.totalorder %s24, 0
    %p348 = por %p346, %p347
    %p349 = scmp.ne.s32.totalorder %s337, %s338
    %p350 = scmp.eq.s32.totalorder %s25, 1
    %p351 = por %p349, %p350
    %p353 = scmp.ne.s32.totalorder %s338, %s352
    %p354 = scmp.eq.s32.totalorder %s25, 0
    %p355 = por %p353, %p354
    %p356 = scmp.le.s32.totalorder 1, %s19
    %p357 = scmp.lt.s32.totalorder %s19, 3
    %p358 = pnand %p356, %p357
    %p359 = pneg %p358
    // Predicated region
    $region9: #{gps_model.1} parent=5 // pred_check
      _
    $region10: #{gps_model.1} parent=5 // pred_check_branch
      %361 = sbr.rel (%p358) target = $region12
    $region11: #{gps_model.1} parent=5 // pred_region
      %s362 = ssub.s32 %s19, 1
      // Predicated region
      $region13: #{gps_model.1} parent=11 // pred_check
        %p363 = pneg %p40
      $region14: #{gps_model.1} parent=11 // pred_check_branch
        %365 = sbr.rel (%p363) target = $region16
      $region15: #{gps_model.1} parent=11 // pred_region
        _
      $region16: #{gps_model.1} parent=11 // pred_fallthru
        _
      // Predicated region
      $region17: #{gps_model.1} parent=11 // pred_check
        %p366 = pneg %p61
      $region18: #{gps_model.1} parent=11 // pred_check_branch
        %368 = sbr.rel (%p366) target = $region20
      $region19: #{gps_model.1} parent=11 // pred_region
        _
      $region20: #{gps_model.1} parent=11 // pred_fallthru
        _
      // Predicated region
      $region21: #{gps_model.1} parent=11 // pred_check
        %p369 = pneg %p82
      $region22: #{gps_model.1} parent=11 // pred_check_branch
        %371 = sbr.rel (%p369) target = $region24
      $region23: #{gps_model.1} parent=11 // pred_region
        _
      $region24: #{gps_model.1} parent=11 // pred_fallthru
        _
      // Predicated region
      $region25: #{gps_model.1} parent=11 // pred_check
        %p372 = pneg %p103
      $region26: #{gps_model.1} parent=11 // pred_check_branch
        %374 = sbr.rel (%p372) target = $region28
      $region27: #{gps_model.1} parent=11 // pred_region
        _
      $region28: #{gps_model.1} parent=11 // pred_fallthru
        _
      // Predicated region
      $region29: #{gps_model.1} parent=11 // pred_check
        %p375 = pneg %p124
      $region30: #{gps_model.1} parent=11 // pred_check_branch
        %377 = sbr.rel (%p375) target = $region32
      $region31: #{gps_model.1} parent=11 // pred_region
        _
      $region32: #{gps_model.1} parent=11 // pred_fallthru
        _
      // Predicated region
      $region33: #{gps_model.1} parent=11 // pred_check
        %p378 = pneg %p145
      $region34: #{gps_model.1} parent=11 // pred_check_branch
        %380 = sbr.rel (%p378) target = $region36
      $region35: #{gps_model.1} parent=11 // pred_region
        _
      $region36: #{gps_model.1} parent=11 // pred_fallthru
        _
    $region12: #{gps_model.1} parent=5 // pred_fallthru
      _
    %p381 = scmp.lt.s32.totalorder %s19, 2
    // Predicated region
    $region37: #{gps_model.1} parent=5 // pred_check
      %p382 = pneg %p381
    $region38: #{gps_model.1} parent=5 // pred_check_branch
      %384 = sbr.rel (%p382) target = $region40
    $region39: #{gps_model.1} parent=5 // pred_region
      // Predicated region
      $region41: #{gps_model.1} parent=39 // pred_check
        %p385 = pneg %p165
      $region42: #{gps_model.1} parent=39 // pred_check_branch
        %387 = sbr.rel (%p385) target = $region44
      $region43: #{gps_model.1} parent=39 // pred_region
        %p388 = scmp.lt.s32.totalorder %s19, 1
        %s389 = scalar_select %p388, %s19, 1
        %s390 = smul.addr %s389, 4
        %s391 = smul.addr %s390, 4
        %s392 = scalar_lea.vmem %s6, %s391
      $region44: #{gps_model.1} parent=39 // pred_fallthru
        _
      // Predicated region
      $region45: #{gps_model.1} parent=39 // pred_check
        %p393 = pneg %p191
      $region46: #{gps_model.1} parent=39 // pred_check_branch
        %395 = sbr.rel (%p393) target = $region48
      $region47: #{gps_model.1} parent=39 // pred_region
        %p396 = scmp.lt.s32.totalorder %s19, 1
        %s397 = scalar_select %p396, %s19, 1
        %s398 = smul.addr %s397, 48
        %s399 = smul.addr %s398, 4
        %s400 = scalar_lea.vmem %s7, %s399
      $region48: #{gps_model.1} parent=39 // pred_fallthru
        _
      // Predicated region
      $region49: #{gps_model.1} parent=39 // pred_check
        %p401 = pneg %p217
      $region50: #{gps_model.1} parent=39 // pred_check_branch
        %403 = sbr.rel (%p401) target = $region52
      $region51: #{gps_model.1} parent=39 // pred_region
        %p404 = scmp.lt.s32.totalorder %s19, 1
        %s405 = scalar_select %p404, %s19, 1
        %s406 = smul.addr %s405, 4
        %s407 = smul.addr %s406, 4
        %s408 = scalar_lea.vmem %s8, %s407
      $region52: #{gps_model.1} parent=39 // pred_fallthru
        _
      // Predicated region
      $region53: #{gps_model.1} parent=39 // pred_check
        %p409 = pneg %p243
      $region54: #{gps_model.1} parent=39 // pred_check_branch
        %411 = sbr.rel (%p409) target = $region56
      $region55: #{gps_model.1} parent=39 // pred_region
        %p412 = scmp.lt.s32.totalorder %s19, 1
        %s413 = scalar_select %p412, %s19, 1
        %s414 = smul.addr %s413, 4
        %s415 = smul.addr %s414, 4
        %s416 = scalar_lea.vmem %s9, %s415
      $region56: #{gps_model.1} parent=39 // pred_fallthru
        _
      // Predicated region
      $region57: #{gps_model.1} parent=39 // pred_check
        %p417 = pneg %p269
      $region58: #{gps_model.1} parent=39 // pred_check_branch
        %419 = sbr.rel (%p417) target = $region60
      $region59: #{gps_model.1} parent=39 // pred_region
        %p420 = scmp.lt.s32.totalorder %s19, 1
        %s421 = scalar_select %p420, %s19, 1
        %s422 = smul.addr %s421, 8
        %s423 = smul.addr %s422, 4
        %s424 = scalar_lea.vmem %s10, %s423
      $region60: #{gps_model.1} parent=39 // pred_fallthru
        _
      // Predicated region
      $region61: #{gps_model.1} parent=39 // pred_check
        %p425 = pneg %p295
      $region62: #{gps_model.1} parent=39 // pred_check_branch
        %427 = sbr.rel (%p425) target = $region64
      $region63: #{gps_model.1} parent=39 // pred_region
        %p428 = scmp.lt.s32.totalorder %s19, 1
        %s429 = scalar_select %p428, %s19, 1
        %s430 = smul.addr %s429, 2
        %s431 = smul.addr %s430, 8
        %s432 = scalar_lea.vmem %s11, %s431
      $region64: #{gps_model.1} parent=39 // pred_fallthru
        _
      // Predicated region
      $region65: #{gps_model.1} parent=39 // pred_check
        %p433 = pneg %p321
      $region66: #{gps_model.1} parent=39 // pred_check_branch
        %435 = sbr.rel (%p433) target = $region68
      $region67: #{gps_model.1} parent=39 // pred_region
        %p436 = scmp.lt.s32.totalorder %s19, 1
        %s437 = scalar_select %p436, %s19, 1
        %s438 = scalar_lea.vmem %s12, %s437
      $region68: #{gps_model.1} parent=39 // pred_fallthru
        _
    $region40: #{gps_model.1} parent=5 // pred_fallthru
      _
    %p439 = scmp.le.s32.totalorder 1, %s19
    %p440 = scmp.lt.s32.totalorder %s19, 3
    %p441 = pnand %p439, %p440
    %p442 = pneg %p441
    // Predicated region
    $region69: #{gps_model.1} parent=5 // pred_check
      _
    $region70: #{gps_model.1} parent=5 // pred_check_branch
      %444 = sbr.rel (%p441) target = $region72
    $region71: #{gps_model.1} parent=5 // pred_region
      %s445 = ssub.s32 %s19, 1
      %p446 = pneg %p40
      %p447 = pneg %p37
      %p448 = pneg %p61
      %p449 = pneg %p58
      %p450 = pneg %p82
      %p451 = pneg %p79
      %p452 = pneg %p103
      %p453 = pneg %p100
      %p454 = pneg %p124
      %p455 = pneg %p121
      %p456 = pneg %p145
      %p457 = pneg %p142
      %p458 = scmp.lt.s32.totalorder %s24, 1
      %s459 = scalar_select %p458, %s24, 1
      %s460 = smul.addr %s459, 4
      %s461 = smul.addr %s460, 4
      %s462 = scalar_lea.vmem %s6, %s461
      %p463 = pneg %p171
      %p464 = pneg %p168
      %p465 = scmp.lt.s32.totalorder %s24, 1
      %s466 = scalar_select %p465, %s24, 1
      %s467 = smul.addr %s466, 48
      %s468 = smul.addr %s467, 4
      %s469 = scalar_lea.vmem %s7, %s468
      %p470 = pneg %p197
      %p471 = pneg %p194
      %p472 = scmp.lt.s32.totalorder %s24, 1
      %s473 = scalar_select %p472, %s24, 1
      %s474 = smul.addr %s473, 4
      %s475 = smul.addr %s474, 4
      %s476 = scalar_lea.vmem %s8, %s475
      %p477 = pneg %p223
      %p478 = pneg %p220
      %p479 = scmp.lt.s32.totalorder %s24, 1
      %s480 = scalar_select %p479, %s24, 1
      %s481 = smul.addr %s480, 4
      %s482 = smul.addr %s481, 4
      %s483 = scalar_lea.vmem %s9, %s482
      %p484 = pneg %p249
      %p485 = pneg %p246
      %p486 = scmp.lt.s32.totalorder %s24, 1
      %s487 = scalar_select %p486, %s24, 1
      %s488 = smul.addr %s487, 8
      %s489 = smul.addr %s488, 4
      %s490 = scalar_lea.vmem %s10, %s489
      %p491 = pneg %p275
      %p492 = pneg %p272
      %p493 = scmp.lt.s32.totalorder %s24, 1
      %s494 = scalar_select %p493, %s24, 1
      %s495 = smul.addr %s494, 2
      %s496 = smul.addr %s495, 8
      %s497 = scalar_lea.vmem %s11, %s496
      %p498 = pneg %p301
      %p499 = pneg %p298
      %p500 = scmp.lt.s32.totalorder %s24, 1
      %s501 = scalar_select %p500, %s24, 1
      %s502 = scalar_lea.vmem %s12, %s501
      %p503 = pneg %p327
      %p504 = pneg %p324
      %p505 = pneg %p348
      %p506 = pneg %p345
      %p507 = scmp.lt.s32.totalorder %s24, 1
      %s508 = scalar_select %p507, %s24, 1
      %s509 = smul.addr %s508, 4
      %s510 = smul.addr %s509, 4
      %s511 = scalar_lea.vmem %s6, %s510
      %p512 = scmp.lt.s32.totalorder %s24, 1
      %s513 = scalar_select %p512, %s24, 1
      %s514 = smul.addr %s513, 48
      %s515 = smul.addr %s514, 4
      %s516 = scalar_lea.vmem %s7, %s515
      %p517 = scmp.lt.s32.totalorder %s24, 1
      %s518 = scalar_select %p517, %s24, 1
      %s519 = smul.addr %s518, 4
      %s520 = smul.addr %s519, 4
      %s521 = scalar_lea.vmem %s8, %s520
      %p522 = scmp.lt.s32.totalorder %s24, 1
      %s523 = scalar_select %p522, %s24, 1
      %s524 = smul.addr %s523, 4
      %s525 = smul.addr %s524, 4
      %s526 = scalar_lea.vmem %s9, %s525
      %p527 = scmp.lt.s32.totalorder %s24, 1
      %s528 = scalar_select %p527, %s24, 1
      %s529 = smul.addr %s528, 8
      %s530 = smul.addr %s529, 4
      %s531 = scalar_lea.vmem %s10, %s530
      %p532 = scmp.lt.s32.totalorder %s24, 1
      %s533 = scalar_select %p532, %s24, 1
      %s534 = smul.addr %s533, 2
      %s535 = smul.addr %s534, 8
      %s536 = scalar_lea.vmem %s11, %s535
      %p537 = scmp.lt.s32.totalorder %s24, 1
      %s538 = scalar_select %p537, %s24, 1
      %s539 = scalar_lea.vmem %s12, %s538
      %p541 = scmp.eq.s32.totalorder %s24, 0
      // Predicated region
      $region73: #{gps_model.1} parent=71 // pred_check
        %p542 = pneg %p541
      $region74: #{gps_model.1} parent=71 // pred_check_branch
        %544 = sbr.rel (%p542) target = $region76
      $region75: #{gps_model.1} parent=71 // pred_region
        %v545 = vld [vmem:[%s0] sm:$0xff]
        %v546 = vld [vmem:[%s0 + $0x8] sm:$0xff]
        %v547 = vpack.c.bf16 %v546, %v545
        %v548 = vld [vmem:[%s2] sm:$0xf]
        %v549 = vld [vmem:[%s3] sm:$0x1]
        %v551 = vlaneseq
        %v552 = vshrl.u32 %v551, 7
        %v553 = vsub.s32 0, %v552
        %v554 = vrot.slane %v549, %v553
        %vm556 = vcmask 64512
        %v558 = vsel %vm556, %v547, 0
        %vm560 = vcmask 1043456
        %v562 = vsel %vm560, %v548, 0
        %564 = vmatprep.subr.bf16.mxu0 0
        %565 = vmatpush1.bf16.msra.mxu0 %v562
        %566 = vmatprep.subr.bf16.mxu0 0
        %567 = vmatpush1.bf16.msra.mxu0 0
        %568 = vmatprep.subr.bf16.mxu0 0
        %569 = vmatpush1.bf16.msra.mxu0 0
        %570 = vmatprep.subr.bf16.mxu0 0
        %571 = vmatpush1.bf16.msra.mxu0 0
        %572 = vmatprep.subr.bf16.mxu0 0
        %573 = vmatpush1.bf16.msra.mxu0 0
        %574 = vmatprep.subr.bf16.mxu0 0
        %575 = vmatpush1.bf16.msra.mxu0 0
        %576 = vmatprep.subr.bf16.mxu0 0
        %577 = vmatpush1.bf16.msra.mxu0 0
        %578 = vmatprep.subr.bf16.mxu0 0
        %579 = vmatpush1.bf16.msra.mxu0 0
        %580 = vmatprep.subr.bf16.mxu0 0
        %581 = vmatpush1.bf16.msra.mxu0 0
        %582 = vmatprep.subr.bf16.mxu0 0
        %583 = vmatpush1.bf16.msra.mxu0 0
        %584 = vmatprep.subr.bf16.mxu0 0
        %585 = vmatpush1.bf16.msra.mxu0 0
        %586 = vmatprep.subr.bf16.mxu0 0
        %587 = vmatpush1.bf16.msra.mxu0 0
        %588 = vmatprep.subr.bf16.mxu0 0
        %589 = vmatpush1.bf16.msra.mxu0 0
        %590 = vmatprep.subr.bf16.mxu0 0
        %591 = vmatpush1.bf16.msra.mxu0 0
        %592 = vmatprep.subr.bf16.mxu0 0
        %593 = vmatpush1.bf16.msra.mxu0 0
        %594 = vmatprep.subr.bf16.mxu0 0
        %595 = vmatpush1.bf16.msra.mxu0 0
        %596 = vmatprep.mubr.bf16.mxu0 0
        %597 = vmatmul.mubr.bf16.gmra.mrb[0].mxu0 %v558
        %v598 = vpop.f32.mrb[0].mxu0
        %v599 = vadd.f32 %v554, %v598
        %v600 = vpop.f32.mrb[0].mxu0
        %v601 = vpop.f32.mrb[0].mxu0
        %v602 = vadd.f32 %v554, %v601
        %v603 = vpop.f32.mrb[0].mxu0
        %604 = vdwg.mxu0
        %v605 = vmax.f32 %v599, 0.0
        %v606 = vmax.f32 %v602, 0.0
        %vm607 = vcmask 261120
        %608 = vst.msk [vmem:[#allocation2] sm:$0xff] %vm607, %v605
        %609 = vst.msk [vmem:[#allocation2 + $0x8] sm:$0xff] %vm607, %v606
      $region76: #{gps_model.1} parent=71 // pred_fallthru
        _
      %v610 = vld [vmem:[#allocation2] sm:$0xff]
      %v611 = vld [vmem:[#allocation2 + $0x8] sm:$0xff]
      %v612 = vpack.c.bf16 %v611, %v610
      %v613 = vld [vmem:[%s536] sm:$0xff]
      %v614 = vld [vmem:[%s536 + $0x8] sm:$0x1]
      %v615 = vld [vmem:[%s511] sm:$0xf]
      %v616 = vld [vmem:[%s511 + $0x4] sm:$0xf]
      %v617 = vld [vmem:[%s511 + $0x8] sm:$0xf]
      %v618 = vld [vmem:[%s511 + $0xc] sm:$0xf]
      %v623 = vunpack.c.l.b16 %v615
      %v624 = vunpack.c.l.b16 %v616
      %v625 = vunpack.c.l.b16 %v617
      %v626 = vunpack.c.l.b16 %v618
      %v627 = vpack.c.b16 %v624, %v623
      %v628 = vpack.c.b16 %v626, %v625
      %vm631 = vcmask 261120
      %v633 = vsel %vm631, %v612, 0
      %635 = vmatprep.subr.bf16.mxu0 0
      %636 = vmatpush1.bf16.msra.mxu0 %v627
      %637 = vmatprep.subr.bf16.mxu0 0
      %638 = vmatpush1.bf16.msra.mxu0 %v628
      %639 = vmatprep.subr.bf16.mxu0 0
      %640 = vmatpush1.bf16.msra.mxu0 0
      %641 = vmatprep.subr.bf16.mxu0 0
      %642 = vmatpush1.bf16.msra.mxu0 0
      %643 = vmatprep.subr.bf16.mxu0 0
      %644 = vmatpush1.bf16.msra.mxu0 0
      %645 = vmatprep.subr.bf16.mxu0 0
      %646 = vmatpush1.bf16.msra.mxu0 0
      %647 = vmatprep.subr.bf16.mxu0 0
      %648 = vmatpush1.bf16.msra.mxu0 0
      %649 = vmatprep.subr.bf16.mxu0 0
      %650 = vmatpush1.bf16.msra.mxu0 0
      %651 = vmatprep.subr.bf16.mxu0 0
      %652 = vmatpush1.bf16.msra.mxu0 0
      %653 = vmatprep.subr.bf16.mxu0 0
      %654 = vmatpush1.bf16.msra.mxu0 0
      %655 = vmatprep.subr.bf16.mxu0 0
      %656 = vmatpush1.bf16.msra.mxu0 0
      %657 = vmatprep.subr.bf16.mxu0 0
      %658 = vmatpush1.bf16.msra.mxu0 0
      %659 = vmatprep.subr.bf16.mxu0 0
      %660 = vmatpush1.bf16.msra.mxu0 0
      %661 = vmatprep.subr.bf16.mxu0 0
      %662 = vmatpush1.bf16.msra.mxu0 0
      %663 = vmatprep.subr.bf16.mxu0 0
      %664 = vmatpush1.bf16.msra.mxu0 0
      %665 = vmatprep.subr.bf16.mxu0 0
      %666 = vmatpush1.bf16.msra.mxu0 0
      %667 = vmatprep.mubr.bf16.mxu0 0
      %668 = vmatmul.mubr.bf16.gmra.mrb[0].mxu0 %v633
      %v669 = vpop.f32.mrb[0].mxu0
      %v670 = vadd.f32 0.0, %v669
      %v671 = vpop.f32.mrb[0].mxu0
      %v672 = vpop.f32.mrb[0].mxu0
      %v673 = vadd.f32 0.0, %v672
      %v674 = vpop.f32.mrb[0].mxu0
      %675 = vdwg.mxu0
      %v676 = vld [vmem:[%s1] sm:$0xf]
      %v677 = vld [vmem:[%s1 + $0x4] sm:$0xf]
      %v678 = vpack.c.bf16 %v673, %v670
      %v679 = vlaneseq
      %v680 = vshrl.u32 %v679, 7
      %v681 = vsub.s32 0, %v680
      %v682 = vrot.slane %v613, %v681
      %v685 = vunpack.c.l.b16 %v676
      %v686 = vunpack.c.l.b16 %v677
      %v687 = vpack.c.b16 %v686, %v685
      %vm688 = vcmask 130048
      %v690 = vsel %vm688, %v687, 0
      %692 = vmatprep.subr.bf16.mxu0 0
      %693 = vmatpush1.bf16.msra.mxu0 %v678
      %694 = vmatprep.subr.bf16.mxu0 0
      %695 = vmatpush1.bf16.msra.mxu0 0
      %696 = vmatprep.subr.bf16.mxu0 0
      %697 = vmatpush1.bf16.msra.mxu0 0
      %698 = vmatprep.subr.bf16.mxu0 0
      %699 = vmatpush1.bf16.msra.mxu0 0
      %700 = vmatprep.subr.bf16.mxu0 0
      %701 = vmatpush1.bf16.msra.mxu0 0
      %702 = vmatprep.subr.bf16.mxu0 0
      %703 = vmatpush1.bf16.msra.mxu0 0
      %704 = vmatprep.subr.bf16.mxu0 0
      %705 = vmatpush1.bf16.msra.mxu0 0
      %706 = vmatprep.subr.bf16.mxu0 0
      %707 = vmatpush1.bf16.msra.mxu0 0
      %708 = vmatprep.subr.bf16.mxu0 0
      %709 = vmatpush1.bf16.msra.mxu0 0
      %710 = vmatprep.subr.bf16.mxu0 0
      %711 = vmatpush1.bf16.msra.mxu0 0
      %712 = vmatprep.subr.bf16.mxu0 0
      %713 = vmatpush1.bf16.msra.mxu0 0
      %714 = vmatprep.subr.bf16.mxu0 0
      %715 = vmatpush1.bf16.msra.mxu0 0
      %716 = vmatprep.subr.bf16.mxu0 0
      %717 = vmatpush1.bf16.msra.mxu0 0
      %718 = vmatprep.subr.bf16.mxu0 0
      %719 = vmatpush1.bf16.msra.mxu0 0
      %720 = vmatprep.subr.bf16.mxu0 0
      %721 = vmatpush1.bf16.msra.mxu0 0
      %722 = vmatprep.subr.bf16.mxu0 0
      %723 = vmatpush1.bf16.msra.mxu0 0
      %724 = vmatprep.mubr.bf16.mxu0 0
      %725 = vmatmul.mubr.bf16.gmra.mrb[0].mxu0 %v690
      %v726 = vpop.f32.mrb[0].mxu0
      %v727 = vadd.f32 %v682, %v726
      %v728 = vpop.f32.mrb[0].mxu0
      %v729 = vpop.f32.mrb[0].mxu0
      %v730 = vadd.f32 %v682, %v729
      %v731 = vpop.f32.mrb[0].mxu0
      %732 = vdwg.mxu0
      %v733 = vadd.f32 %v610, %v727
      %v734 = vadd.f32 %v611, %v730
      %v735 = vsel %vm631, %v733, 0.0
      %v736 = vsel %vm631, %v734, 0.0
      %v737 = vadd.f32 %v735, %v736
      %v738 = vrot.slane %v737, 4
      %v739 = vadd.f32 %v737, %v738
      %v740 = vrot.slane %v739, 2
      %v741 = vadd.f32 %v739, %v740
      %v742 = vrot.slane %v741, 1
      %v743 = vadd.f32 %v741, %v742
      %v744 = vrcp.pop 16.0
      %v745 = vmul.f32 %v743, %v744
      %v746 = vsub.f32 %v733, %v745
      %v747 = vsub.f32 %v734, %v745
      %v748 = vmul.f32 %v746, %v746
      %v749 = vmul.f32 %v747, %v747
      %v750 = vsel %vm631, %v748, 0.0
      %v751 = vsel %vm631, %v749, 0.0
      %v752 = vadd.f32 %v750, %v751
      %v753 = vrot.slane %v752, 4
      %v754 = vadd.f32 %v752, %v753
      %v755 = vrot.slane %v754, 2
      %v756 = vadd.f32 %v754, %v755
      %v757 = vrot.slane %v756, 1
      %v758 = vadd.f32 %v756, %v757
      %v759 = vmul.f32 %v758, %v744
      %v760 = vadd.f32 %v759, 1e-05
      %v761 = vrsqrt.pop %v760
      %v762 = vmul.f32 %v746, %v761
      %v763 = vmul.f32 %v747, %v761
      %v764 = vlaneseq
      %v765 = vshrl.u32 %v764, 7
      %v766 = vsub.s32 1, %v765
      %v767 = vrot.slane %v613, %v766
      %v768 = vmul.f32 %v762, %v767
      %v769 = vmul.f32 %v763, %v767
      %v770 = vlaneseq
      %v771 = vshrl.u32 %v770, 7
      %v772 = vsub.s32 2, %v771
      %v773 = vrot.slane %v613, %v772
      %v774 = vadd.f32 %v768, %v773
      %v775 = vadd.f32 %v769, %v773
      %v776 = vld [vmem:[%s516] sm:$0xf]
      %v777 = vld [vmem:[%s516 + $0x4] sm:$0xf]
      %v778 = vld [vmem:[%s516 + $0x8] sm:$0xf]
      %v779 = vld [vmem:[%s516 + $0xc] sm:$0xf]
      %v780 = vld [vmem:[%s516 + $0x10] sm:$0xf]
      %v781 = vld [vmem:[%s516 + $0x14] sm:$0xf]
      %v782 = vld [vmem:[%s516 + $0x18] sm:$0xf]
      %v783 = vld [vmem:[%s516 + $0x1c] sm:$0xf]
      %v784 = vld [vmem:[%s516 + $0x20] sm:$0xf]
      %v785 = vld [vmem:[%s516 + $0x24] sm:$0xf]
      %v786 = vld [vmem:[%s516 + $0x28] sm:$0xf]
      %v787 = vld [vmem:[%s516 + $0x2c] sm:$0xf]
      %v788 = vld [vmem:[%s516 + $0x30] sm:$0xf]
      %v789 = vld [vmem:[%s516 + $0x34] sm:$0xf]
      %v790 = vld [vmem:[%s516 + $0x38] sm:$0xf]
      %v791 = vld [vmem:[%s516 + $0x3c] sm:$0xf]
      %v796 = vunpack.c.l.b16 %v776
      %v797 = vunpack.c.l.b16 %v777
      %v798 = vunpack.c.l.b16 %v778
      %v799 = vunpack.c.l.b16 %v779
      %v800 = vpack.c.b16 %v797, %v796
      %v801 = vpack.c.b16 %v799, %v798
      %804 = vmatprep.subr.bf16.mxu0 0
      %805 = vmatpush1.bf16.msra.mxu0 %v800
      %806 = vmatprep.subr.bf16.mxu0 0
      %807 = vmatpush1.bf16.msra.mxu0 %v801
      %808 = vmatprep.subr.bf16.mxu0 0
      %809 = vmatpush1.bf16.msra.mxu0 0
      %810 = vmatprep.subr.bf16.mxu0 0
      %811 = vmatpush1.bf16.msra.mxu0 0
      %812 = vmatprep.subr.bf16.mxu0 0
      %813 = vmatpush1.bf16.msra.mxu0 0
      %814 = vmatprep.subr.bf16.mxu0 0
      %815 = vmatpush1.bf16.msra.mxu0 0
      %816 = vmatprep.subr.bf16.mxu0 0
      %817 = vmatpush1.bf16.msra.mxu0 0
      %818 = vmatprep.subr.bf16.mxu0 0
      %819 = vmatpush1.bf16.msra.mxu0 0
      %820 = vmatprep.subr.bf16.mxu0 0
      %821 = vmatpush1.bf16.msra.mxu0 0
      %822 = vmatprep.subr.bf16.mxu0 0
      %823 = vmatpush1.bf16.msra.mxu0 0
      %824 = vmatprep.subr.bf16.mxu0 0
      %825 = vmatpush1.bf16.msra.mxu0 0
      %826 = vmatprep.subr.bf16.mxu0 0
      %827 = vmatpush1.bf16.msra.mxu0 0
      %828 = vmatprep.subr.bf16.mxu0 0
      %829 = vmatpush1.bf16.msra.mxu0 0
      %830 = vmatprep.subr.bf16.mxu0 0
      %831 = vmatpush1.bf16.msra.mxu0 0
      %832 = vmatprep.subr.bf16.mxu0 0
      %833 = vmatpush1.bf16.msra.mxu0 0
      %834 = vmatprep.subr.bf16.mxu0 0
      %835 = vmatpush1.bf16.msra.mxu0 0
      %836 = vmatprep.mubr.bf16.mxu0 0
      %837 = vmatmul.mubr.bf16.gmra.mrb[0].mxu0 %v633
      %v838 = vpop.f32.mrb[0].mxu0
      %v839 = vadd.f32 0.0, %v838
      %v840 = vpop.f32.mrb[0].mxu0
      %v841 = vpop.f32.mrb[0].mxu0
      %v842 = vadd.f32 0.0, %v841
      %v843 = vpop.f32.mrb[0].mxu0
      %844 = vdwg.mxu0
      %v849 = vunpack.c.l.b16 %v780
      %v850 = vunpack.c.l.b16 %v781
      %v851 = vunpack.c.l.b16 %v782
      %v852 = vunpack.c.l.b16 %v783
      %v853 = vpack.c.b16 %v850, %v849
      %v854 = vpack.c.b16 %v852, %v851
      %857 = vmatprep.subr.bf16.mxu0 0
      %858 = vmatpush1.bf16.msra.mxu0 %v853
      %859 = vmatprep.subr.bf16.mxu0 0
      %860 = vmatpush1.bf16.msra.mxu0 %v854
      %861 = vmatprep.subr.bf16.mxu0 0
      %862 = vmatpush1.bf16.msra.mxu0 0
      %863 = vmatprep.subr.bf16.mxu0 0
      %864 = vmatpush1.bf16.msra.mxu0 0
      %865 = vmatprep.subr.bf16.mxu0 0
      %866 = vmatpush1.bf16.msra.mxu0 0
      %867 = vmatprep.subr.bf16.mxu0 0
      %868 = vmatpush1.bf16.msra.mxu0 0
      %869 = vmatprep.subr.bf16.mxu0 0
      %870 = vmatpush1.bf16.msra.mxu0 0
      %871 = vmatprep.subr.bf16.mxu0 0
      %872 = vmatpush1.bf16.msra.mxu0 0
      %873 = vmatprep.subr.bf16.mxu0 0
      %874 = vmatpush1.bf16.msra.mxu0 0
      %875 = vmatprep.subr.bf16.mxu0 0
      %876 = vmatpush1.bf16.msra.mxu0 0
      %877 = vmatprep.subr.bf16.mxu0 0
      %878 = vmatpush1.bf16.msra.mxu0 0
      %879 = vmatprep.subr.bf16.mxu0 0
      %880 = vmatpush1.bf16.msra.mxu0 0
      %881 = vmatprep.subr.bf16.mxu0 0
      %882 = vmatpush1.bf16.msra.mxu0 0
      %883 = vmatprep.subr.bf16.mxu0 0
      %884 = vmatpush1.bf16.msra.mxu0 0
      %885 = vmatprep.subr.bf16.mxu0 0
      %886 = vmatpush1.bf16.msra.mxu0 0
      %887 = vmatprep.subr.bf16.mxu0 0
      %888 = vmatpush1.bf16.msra.mxu0 0
      %889 = vmatprep.mubr.bf16.mxu0 0
      %890 = vmatmul.mubr.bf16.gmra.mrb[0].mxu0 %v633
      %v891 = vpop.f32.mrb[0].mxu0
      %v892 = vadd.f32 0.0, %v891
      %v893 = vpop.f32.mrb[0].mxu0
      %v894 = vpop.f32.mrb[0].mxu0
      %v895 = vadd.f32 0.0, %v894
      %v896 = vpop.f32.mrb[0].mxu0
      %897 = vdwg.mxu0
      %v902 = vunpack.c.l.b16 %v784
      %v903 = vunpack.c.l.b16 %v785
      %v904 = vunpack.c.l.b16 %v786
      %v905 = vunpack.c.l.b16 %v787
      %v906 = vpack.c.b16 %v903, %v902
      %v907 = vpack.c.b16 %v905, %v904
      %910 = vmatprep.subr.bf16.mxu0 0
      %911 = vmatpush1.bf16.msra.mxu0 %v906
      %912 = vmatprep.subr.bf16.mxu0 0
      %913 = vmatpush1.bf16.msra.mxu0 %v907
      %914 = vmatprep.subr.bf16.mxu0 0
      %915 = vmatpush1.bf16.msra.mxu0 0
      %916 = vmatprep.subr.bf16.mxu0 0
      %917 = vmatpush1.bf16.msra.mxu0 0
      %918 = vmatprep.subr.bf16.mxu0 0
      %919 = vmatpush1.bf16.msra.mxu0 0
      %920 = vmatprep.subr.bf16.mxu0 0
      %921 = vmatpush1.bf16.msra.mxu0 0
      %922 = vmatprep.subr.bf16.mxu0 0
      %923 = vmatpush1.bf16.msra.mxu0 0
      %924 = vmatprep.subr.bf16.mxu0 0
      %925 = vmatpush1.bf16.msra.mxu0 0
      %926 = vmatprep.subr.bf16.mxu0 0
      %927 = vmatpush1.bf16.msra.mxu0 0
      %928 = vmatprep.subr.bf16.mxu0 0
      %929 = vmatpush1.bf16.msra.mxu0 0
      %930 = vmatprep.subr.bf16.mxu0 0
      %931 = vmatpush1.bf16.msra.mxu0 0
      %932 = vmatprep.subr.bf16.mxu0 0
      %933 = vmatpush1.bf16.msra.mxu0 0
      %934 = vmatprep.subr.bf16.mxu0 0
      %935 = vmatpush1.bf16.msra.mxu0 0
      %936 = vmatprep.subr.bf16.mxu0 0
      %937 = vmatpush1.bf16.msra.mxu0 0
      %938 = vmatprep.subr.bf16.mxu0 0
      %939 = vmatpush1.bf16.msra.mxu0 0
      %940 = vmatprep.subr.bf16.mxu0 0
      %941 = vmatpush1.bf16.msra.mxu0 0
      %942 = vmatprep.mubr.bf16.mxu0 0
      %943 = vmatmul.mubr.bf16.gmra.mrb[0].mxu0 %v633
      %v944 = vpop.f32.mrb[0].mxu0
      %v945 = vadd.f32 0.0, %v944
      %v946 = vpop.f32.mrb[0].mxu0
      %v947 = vpop.f32.mrb[0].mxu0
      %v948 = vadd.f32 0.0, %v947
      %v949 = vpop.f32.mrb[0].mxu0
      %950 = vdwg.mxu0
      %v955 = vunpack.c.l.b16 %v788
      %v956 = vunpack.c.l.b16 %v789
      %v957 = vunpack.c.l.b16 %v790
      %v958 = vunpack.c.l.b16 %v791
      %v959 = vpack.c.b16 %v956, %v955
      %v960 = vpack.c.b16 %v958, %v957
      %963 = vmatprep.subr.bf16.mxu0 0
      %964 = vmatpush1.bf16.msra.mxu0 %v959
      %965 = vmatprep.subr.bf16.mxu0 0
      %966 = vmatpush1.bf16.msra.mxu0 %v960
      %967 = vmatprep.subr.bf16.mxu0 0
      %968 = vmatpush1.bf16.msra.mxu0 0
      %969 = vmatprep.subr.bf16.mxu0 0
      %970 = vmatpush1.bf16.msra.mxu0 0
      %971 = vmatprep.subr.bf16.mxu0 0
      %972 = vmatpush1.bf16.msra.mxu0 0
      %973 = vmatprep.subr.bf16.mxu0 0
      %974 = vmatpush1.bf16.msra.mxu0 0
      %975 = vmatprep.subr.bf16.mxu0 0
      %976 = vmatpush1.bf16.msra.mxu0 0
      %977 = vmatprep.subr.bf16.mxu0 0
      %978 = vmatpush1.bf16.msra.mxu0 0
      %979 = vmatprep.subr.bf16.mxu0 0
      %980 = vmatpush1.bf16.msra.mxu0 0
      %981 = vmatprep.subr.bf16.mxu0 0
      %982 = vmatpush1.bf16.msra.mxu0 0
      %983 = vmatprep.subr.bf16.mxu0 0
      %984 = vmatpush1.bf16.msra.mxu0 0
      %985 = vmatprep.subr.bf16.mxu0 0
      %986 = vmatpush1.bf16.msra.mxu0 0
      %987 = vmatprep.subr.bf16.mxu0 0
      %988 = vmatpush1.bf16.msra.mxu0 0
      %989 = vmatprep.subr.bf16.mxu0 0
      %990 = vmatpush1.bf16.msra.mxu0 0
      %991 = vmatprep.subr.bf16.mxu0 0
      %992 = vmatpush1.bf16.msra.mxu0 0
      %993 = vmatprep.subr.bf16.mxu0 0
      %994 = vmatpush1.bf16.msra.mxu0 0
      %995 = vmatprep.mubr.bf16.mxu0 0
      %996 = vmatmul.mubr.bf16.gmra.mrb[0].mxu0 %v633
      %v997 = vpop.f32.mrb[0].mxu0
      %v998 = vadd.f32 0.0, %v997
      %v999 = vpop.f32.mrb[0].mxu0
      %v1000 = vpop.f32.mrb[0].mxu0
      %v1001 = vadd.f32 0.0, %v1000
      %v1002 = vpop.f32.mrb[0].mxu0
      %1003 = vdwg.mxu0
      %s1004 = scalar_lea.vmem %s516, 64
      %v1005 = vld [vmem:[%s1004] sm:$0xf]
      %v1006 = vld [vmem:[%s1004 + $0x4] sm:$0xf]
      %v1007 = vld [vmem:[%s1004 + $0x8] sm:$0xf]
      %v1008 = vld [vmem:[%s1004 + $0xc] sm:$0xf]
      %v1009 = vld [vmem:[%s1004 + $0x10] sm:$0xf]
      %v1010 = vld [vmem:[%s1004 + $0x14] sm:$0xf]
      %v1011 = vld [vmem:[%s1004 + $0x18] sm:$0xf]
      %v1012 = vld [vmem:[%s1004 + $0x1c] sm:$0xf]
      %v1013 = vld [vmem:[%s1004 + $0x20] sm:$0xf]
      %v1014 = vld [vmem:[%s1004 + $0x24] sm:$0xf]
      %v1015 = vld [vmem:[%s1004 + $0x28] sm:$0xf]
      %v1016 = vld [vmem:[%s1004 + $0x2c] sm:$0xf]
      %v1017 = vld [vmem:[%s1004 + $0x30] sm:$0xf]
      %v1018 = vld [vmem:[%s1004 + $0x34] sm:$0xf]
      %v1019 = vld [vmem:[%s1004 + $0x38] sm:$0xf]
      %v1020 = vld [vmem:[%s1004 + $0x3c] sm:$0xf]
      %v1025 = vunpack.c.l.b16 %v1005
      %v1026 = vunpack.c.l.b16 %v1006
      %v1027 = vunpack.c.l.b16 %v1007
      %v1028 = vunpack.c.l.b16 %v1008
      %v1029 = vpack.c.b16 %v1026, %v1025
      %v1030 = vpack.c.b16 %v1028, %v1027
      %1033 = vmatprep.subr.bf16.mxu0 0
      %1034 = vmatpush1.bf16.msra.mxu0 %v1029
      %1035 = vmatprep.subr.bf16.mxu0 0
      %1036 = vmatpush1.bf16.msra.mxu0 %v1030
      %1037 = vmatprep.subr.bf16.mxu0 0
      %1038 = vmatpush1.bf16.msra.mxu0 0
      %1039 = vmatprep.subr.bf16.mxu0 0
      %1040 = vmatpush1.bf16.msra.mxu0 0
      %1041 = vmatprep.subr.bf16.mxu0 0
      %1042 = vmatpush1.bf16.msra.mxu0 0
      %1043 = vmatprep.subr.bf16.mxu0 0
      %1044 = vmatpush1.bf16.msra.mxu0 0
      %1045 = vmatprep.subr.bf16.mxu0 0
      %1046 = vmatpush1.bf16.msra.mxu0 0
      %1047 = vmatprep.subr.bf16.mxu0 0
      %1048 = vmatpush1.bf16.msra.mxu0 0
      %1049 = vmatprep.subr.bf16.mxu0 0
      %1050 = vmatpush1.bf16.msra.mxu0 0
      %1051 = vmatprep.subr.bf16.mxu0 0
      %1052 = vmatpush1.bf16.msra.mxu0 0
      %1053 = vmatprep.subr.bf16.mxu0 0
      %1054 = vmatpush1.bf16.msra.mxu0 0
      %1055 = vmatprep.subr.bf16.mxu0 0
      %1056 = vmatpush1.bf16.msra.mxu0 0
      %1057 = vmatprep.subr.bf16.mxu0 0
      %1058 = vmatpush1.bf16.msra.mxu0 0
      %1059 = vmatprep.subr.bf16.mxu0 0
      %1060 = vmatpush1.bf16.msra.mxu0 0
      %1061 = vmatprep.subr.bf16.mxu0 0
      %1062 = vmatpush1.bf16.msra.mxu0 0
      %1063 = vmatprep.subr.bf16.mxu0 0
      %1064 = vmatpush1.bf16.msra.mxu0 0
      %1065 = vmatprep.mubr.bf16.mxu0 0
      %1066 = vmatmul.mubr.bf16.gmra.mrb[0].mxu0 %v633
      %v1067 = vpop.f32.mrb[0].mxu0
      %v1068 = vadd.f32 0.0, %v1067
      %v1069 = vpop.f32.mrb[0].mxu0
      %v1070 = vpop.f32.mrb[0].mxu0
      %v1071 = vadd.f32 0.0, %v1070
      %v1072 = vpop.f32.mrb[0].mxu0
      %1073 = vdwg.mxu0
      %v1078 = vunpack.c.l.b16 %v1009
      %v1079 = vunpack.c.l.b16 %v1010
      %v1080 = vunpack.c.l.b16 %v1011
      %v1081 = vunpack.c.l.b16 %v1012
      %v1082 = vpack.c.b16 %v1079, %v1078
      %v1083 = vpack.c.b16 %v1081, %v1080
      %1086 = vmatprep.subr.bf16.mxu0 0
      %1087 = vmatpush1.bf16.msra.mxu0 %v1082
      %1088 = vmatprep.subr.bf16.mxu0 0
      %1089 = vmatpush1.bf16.msra.mxu0 %v1083
      %1090 = vmatprep.subr.bf16.mxu0 0
      %1091 = vmatpush1.bf16.msra.mxu0 0
      %1092 = vmatprep.subr.bf16.mxu0 0
      %1093 = vmatpush1.bf16.msra.mxu0 0
      %1094 = vmatprep.subr.bf16.mxu0 0
      %1095 = vmatpush1.bf16.msra.mxu0 0
      %1096 = vmatprep.subr.bf16.mxu0 0
      %1097 = vmatpush1.bf16.msra.mxu0 0
      %1098 = vmatprep.subr.bf16.mxu0 0
      %1099 = vmatpush1.bf16.msra.mxu0 0
      %1100 = vmatprep.subr.bf16.mxu0 0
      %1101 = vmatpush1.bf16.msra.mxu0 0
      %1102 = vmatprep.subr.bf16.mxu0 0
      %1103 = vmatpush1.bf16.msra.mxu0 0
      %1104 = vmatprep.subr.bf16.mxu0 0
      %1105 = vmatpush1.bf16.msra.mxu0 0
      %1106 = vmatprep.subr.bf16.mxu0 0
      %1107 = vmatpush1.bf16.msra.mxu0 0
      %1108 = vmatprep.subr.bf16.mxu0 0
      %1109 = vmatpush1.bf16.msra.mxu0 0
      %1110 = vmatprep.subr.bf16.mxu0 0
      %1111 = vmatpush1.bf16.msra.mxu0 0
      %1112 = vmatprep.subr.bf16.mxu0 0
      %1113 = vmatpush1.bf16.msra.mxu0 0
      %1114 = vmatprep.subr.bf16.mxu0 0
      %1115 = vmatpush1.bf16.msra.mxu0 0
      %1116 = vmatprep.subr.bf16.mxu0 0
      %1117 = vmatpush1.bf16.msra.mxu0 0
      %1118 = vmatprep.mubr.bf16.mxu0 0
      %1119 = vmatmul.mubr.bf16.gmra.mrb[0].mxu0 %v633
      %v1120 = vpop.f32.mrb[0].mxu0
      %v1121 = vadd.f32 0.0, %v1120
      %v1122 = vpop.f32.mrb[0].mxu0
      %v1123 = vpop.f32.mrb[0].mxu0
      %v1124 = vadd.f32 0.0, %v1123
      %v1125 = vpop.f32.mrb[0].mxu0
      %1126 = vdwg.mxu0
      %v1131 = vunpack.c.l.b16 %v1013
      %v1132 = vunpack.c.l.b16 %v1014
      %v1133 = vunpack.c.l.b16 %v1015
      %v1134 = vunpack.c.l.b16 %v1016
      %v1135 = vpack.c.b16 %v1132, %v1131
      %v1136 = vpack.c.b16 %v1134, %v1133
      %1139 = vmatprep.subr.bf16.mxu0 0
      %1140 = vmatpush1.bf16.msra.mxu0 %v1135
      %1141 = vmatprep.subr.bf16.mxu0 0
      %1142 = vmatpush1.bf16.msra.mxu0 %v1136
      %1143 = vmatprep.subr.bf16.mxu0 0
      %1144 = vmatpush1.bf16.msra.mxu0 0
      %1145 = vmatprep.subr.bf16.mxu0 0
      %1146 = vmatpush1.bf16.msra.mxu0 0
      %1147 = vmatprep.subr.bf16.mxu0 0
      %1148 = vmatpush1.bf16.msra.mxu0 0
      %1149 = vmatprep.subr.bf16.mxu0 0
      %1150 = vmatpush1.bf16.msra.mxu0 0
      %1151 = vmatprep.subr.bf16.mxu0 0
      %1152 = vmatpush1.bf16.msra.mxu0 0
      %1153 = vmatprep.subr.bf16.mxu0 0
      %1154 = vmatpush1.bf16.msra.mxu0 0
      %1155 = vmatprep.subr.bf16.mxu0 0
      %1156 = vmatpush1.bf16.msra.mxu0 0
      %1157 = vmatprep.subr.bf16.mxu0 0
      %1158 = vmatpush1.bf16.msra.mxu0 0
      %1159 = vmatprep.subr.bf16.mxu0 0
      %1160 = vmatpush1.bf16.msra.mxu0 0
      %1161 = vmatprep.subr.bf16.mxu0 0
      %1162 = vmatpush1.bf16.msra.mxu0 0
      %1163 = vmatprep.subr.bf16.mxu0 0
      %1164 = vmatpush1.bf16.msra.mxu0 0
      %1165 = vmatprep.subr.bf16.mxu0 0
      %1166 = vmatpush1.bf16.msra.mxu0 0
      %1167 = vmatprep.subr.bf16.mxu0 0
      %1168 = vmatpush1.bf16.msra.mxu0 0
      %1169 = vmatprep.subr.bf16.mxu0 0
      %1170 = vmatpush1.bf16.msra.mxu0 0
      %1171 = vmatprep.mubr.bf16.mxu0 0
      %1172 = vmatmul.mubr.bf16.gmra.mrb[0].mxu0 %v633
      %v1173 = vpop.f32.mrb[0].mxu0
      %v1174 = vadd.f32 0.0, %v1173
      %v1175 = vpop.f32.mrb[0].mxu0
      %v1176 = vpop.f32.mrb[0].mxu0
      %v1177 = vadd.f32 0.0, %v1176
      %v1178 = vpop.f32.mrb[0].mxu0
      %1179 = vdwg.mxu0
      %v1184 = vunpack.c.l.b16 %v1017
      %v1185 = vunpack.c.l.b16 %v1018
      %v1186 = vunpack.c.l.b16 %v1019
      %v1187 = vunpack.c.l.b16 %v1020
      %v1188 = vpack.c.b16 %v1185, %v1184
      %v1189 = vpack.c.b16 %v1187, %v1186
      %1192 = vmatprep.subr.bf16.mxu0 0
      %1193 = vmatpush1.bf16.msra.mxu0 %v1188
      %1194 = vmatprep.subr.bf16.mxu0 0
      %1195 = vmatpush1.bf16.msra.mxu0 %v1189
      %1196 = vmatprep.subr.bf16.mxu0 0
      %1197 = vmatpush1.bf16.msra.mxu0 0
      %1198 = vmatprep.subr.bf16.mxu0 0
      %1199 = vmatpush1.bf16.msra.mxu0 0
      %1200 = vmatprep.subr.bf16.mxu0 0
      %1201 = vmatpush1.bf16.msra.mxu0 0
      %1202 = vmatprep.subr.bf16.mxu0 0
      %1203 = vmatpush1.bf16.msra.mxu0 0
      %1204 = vmatprep.subr.bf16.mxu0 0
      %1205 = vmatpush1.bf16.msra.mxu0 0
      %1206 = vmatprep.subr.bf16.mxu0 0
      %1207 = vmatpush1.bf16.msra.mxu0 0
      %1208 = vmatprep.subr.bf16.mxu0 0
      %1209 = vmatpush1.bf16.msra.mxu0 0
      %1210 = vmatprep.subr.bf16.mxu0 0
      %1211 = vmatpush1.bf16.msra.mxu0 0
      %1212 = vmatprep.subr.bf16.mxu0 0
      %1213 = vmatpush1.bf16.msra.mxu0 0
      %1214 = vmatprep.subr.bf16.mxu0 0
      %1215 = vmatpush1.bf16.msra.mxu0 0
      %1216 = vmatprep.subr.bf16.mxu0 0
      %1217 = vmatpush1.bf16.msra.mxu0 0
      %1218 = vmatprep.subr.bf16.mxu0 0
      %1219 = vmatpush1.bf16.msra.mxu0 0
      %1220 = vmatprep.subr.bf16.mxu0 0
      %1221 = vmatpush1.bf16.msra.mxu0 0
      %1222 = vmatprep.subr.bf16.mxu0 0
      %1223 = vmatpush1.bf16.msra.mxu0 0
      %1224 = vmatprep.mubr.bf16.mxu0 0
      %1225 = vmatmul.mubr.bf16.gmra.mrb[0].mxu0 %v633
      %v1226 = vpop.f32.mrb[0].mxu0
      %v1227 = vadd.f32 0.0, %v1226
      %v1228 = vpop.f32.mrb[0].mxu0
      %v1229 = vpop.f32.mrb[0].mxu0
      %v1230 = vadd.f32 0.0, %v1229
      %v1231 = vpop.f32.mrb[0].mxu0
      %1232 = vdwg.mxu0
      %s1233 = scalar_lea.vmem %s516, 128
      %v1234 = vld [vmem:[%s1233] sm:$0xf]
      %v1235 = vld [vmem:[%s1233 + $0x4] sm:$0xf]
      %v1236 = vld [vmem:[%s1233 + $0x8] sm:$0xf]
      %v1237 = vld [vmem:[%s1233 + $0xc] sm:$0xf]
      %v1238 = vld [vmem:[%s1233 + $0x10] sm:$0xf]
      %v1239 = vld [vmem:[%s1233 + $0x14] sm:$0xf]
      %v1240 = vld [vmem:[%s1233 + $0x18] sm:$0xf]
      %v1241 = vld [vmem:[%s1233 + $0x1c] sm:$0xf]
      %v1242 = vld [vmem:[%s1233 + $0x20] sm:$0xf]
      %v1243 = vld [vmem:[%s1233 + $0x24] sm:$0xf]
      %v1244 = vld [vmem:[%s1233 + $0x28] sm:$0xf]
      %v1245 = vld [vmem:[%s1233 + $0x2c] sm:$0xf]
      %v1246 = vld [vmem:[%s1233 + $0x30] sm:$0xf]
      %v1247 = vld [vmem:[%s1233 + $0x34] sm:$0xf]
      %v1248 = vld [vmem:[%s1233 + $0x38] sm:$0xf]
      %v1249 = vld [vmem:[%s1233 + $0x3c] sm:$0xf]
      %v1254 = vunpack.c.l.b16 %v1234
      %v1255 = vunpack.c.l.b16 %v1235
      %v1256 = vunpack.c.l.b16 %v1236
      %v1257 = vunpack.c.l.b16 %v1237
      %v1258 = vpack.c.b16 %v1255, %v1254
      %v1259 = vpack.c.b16 %v1257, %v1256
      %1262 = vmatprep.subr.bf16.mxu0 0
      %1263 = vmatpush1.bf16.msra.mxu0 %v1258
      %1264 = vmatprep.subr.bf16.mxu0 0
      %1265 = vmatpush1.bf16.msra.mxu0 %v1259
      %1266 = vmatprep.subr.bf16.mxu0 0
      %1267 = vmatpush1.bf16.msra.mxu0 0
      %1268 = vmatprep.subr.bf16.mxu0 0
      %1269 = vmatpush1.bf16.msra.mxu0 0
      %1270 = vmatprep.subr.bf16.mxu0 0
      %1271 = vmatpush1.bf16.msra.mxu0 0
      %1272 = vmatprep.subr.bf16.mxu0 0
      %1273 = vmatpush1.bf16.msra.mxu0 0
      %1274 = vmatprep.subr.bf16.mxu0 0
      %1275 = vmatpush1.bf16.msra.mxu0 0
      %1276 = vmatprep.subr.bf16.mxu0 0
      %1277 = vmatpush1.bf16.msra.mxu0 0
      %1278 = vmatprep.subr.bf16.mxu0 0
      %1279 = vmatpush1.bf16.msra.mxu0 0
      %1280 = vmatprep.subr.bf16.mxu0 0
      %1281 = vmatpush1.bf16.msra.mxu0 0
      %1282 = vmatprep.subr.bf16.mxu0 0
      %1283 = vmatpush1.bf16.msra.mxu0 0
      %1284 = vmatprep.subr.bf16.mxu0 0
      %1285 = vmatpush1.bf16.msra.mxu0 0
      %1286 = vmatprep.subr.bf16.mxu0 0
      %1287 = vmatpush1.bf16.msra.mxu0 0
      %1288 = vmatprep.subr.bf16.mxu0 0
      %1289 = vmatpush1.bf16.msra.mxu0 0
      %1290 = vmatprep.subr.bf16.mxu0 0
      %1291 = vmatpush1.bf16.msra.mxu0 0
      %1292 = vmatprep.subr.bf16.mxu0 0
      %1293 = vmatpush1.bf16.msra.mxu0 0
      %1294 = vmatprep.mubr.bf16.mxu0 0
      %1295 = vmatmul.mubr.bf16.gmra.mrb[0].mxu0 %v633
      %v1296 = vpop.f32.mrb[0].mxu0
      %v1297 = vadd.f32 0.0, %v1296
      %v1298 = vpop.f32.mrb[0].mxu0
      %v1299 = vpop.f32.mrb[0].mxu0
      %v1300 = vadd.f32 0.0, %v1299
      %v1301 = vpop.f32.mrb[0].mxu0
      %1302 = vdwg.mxu0
      %v1307 = vunpack.c.l.b16 %v1238
      %v1308 = vunpack.c.l.b16 %v1239
      %v1309 = vunpack.c.l.b16 %v1240
      %v1310 = vunpack.c.l.b16 %v1241
      %v1311 = vpack.c.b16 %v1308, %v1307
      %v1312 = vpack.c.b16 %v1310, %v1309
      %1315 = vmatprep.subr.bf16.mxu0 0
      %1316 = vmatpush1.bf16.msra.mxu0 %v1311
      %1317 = vmatprep.subr.bf16.mxu0 0
      %1318 = vmatpush1.bf16.msra.mxu0 %v1312
      %1319 = vmatprep.subr.bf16.mxu0 0
      %1320 = vmatpush1.bf16.msra.mxu0 0
      %1321 = vmatprep.subr.bf16.mxu0 0
      %1322 = vmatpush1.bf16.msra.mxu0 0
      %1323 = vmatprep.subr.bf16.mxu0 0
      %1324 = vmatpush1.bf16.msra.mxu0 0
      %1325 = vmatprep.subr.bf16.mxu0 0
      %1326 = vmatpush1.bf16.msra.mxu0 0
      %1327 = vmatprep.subr.bf16.mxu0 0
      %1328 = vmatpush1.bf16.msra.mxu0 0
      %1329 = vmatprep.subr.bf16.mxu0 0
      %1330 = vmatpush1.bf16.msra.mxu0 0
      %1331 = vmatprep.subr.bf16.mxu0 0
      %1332 = vmatpush1.bf16.msra.mxu0 0
      %1333 = vmatprep.subr.bf16.mxu0 0
      %1334 = vmatpush1.bf16.msra.mxu0 0
      %1335 = vmatprep.subr.bf16.mxu0 0
      %1336 = vmatpush1.bf16.msra.mxu0 0
      %1337 = vmatprep.subr.bf16.mxu0 0
      %1338 = vmatpush1.bf16.msra.mxu0 0
      %1339 = vmatprep.subr.bf16.mxu0 0
      %1340 = vmatpush1.bf16.msra.mxu0 0
      %1341 = vmatprep.subr.bf16.mxu0 0
      %1342 = vmatpush1.bf16.msra.mxu0 0
      %1343 = vmatprep.subr.bf16.mxu0 0
      %1344 = vmatpush1.bf16.msra.mxu0 0
      %1345 = vmatprep.subr.bf16.mxu0 0
      %1346 = vmatpush1.bf16.msra.mxu0 0
      %1347 = vmatprep.mubr.bf16.mxu0 0
      %1348 = vmatmul.mubr.bf16.gmra.mrb[0].mxu0 %v633
      %v1349 = vpop.f32.mrb[0].mxu0
      %v1350 = vadd.f32 0.0, %v1349
      %v1351 = vpop.f32.mrb[0].mxu0
      %v1352 = vpop.f32.mrb[0].mxu0
      %v1353 = vadd.f32 0.0, %v1352
      %v1354 = vpop.f32.mrb[0].mxu0
      %1355 = vdwg.mxu0
      %v1360 = vunpack.c.l.b16 %v1242
      %v1361 = vunpack.c.l.b16 %v1243
      %v1362 = vunpack.c.l.b16 %v1244
      %v1363 = vunpack.c.l.b16 %v1245
      %v1364 = vpack.c.b16 %v1361, %v1360
      %v1365 = vpack.c.b16 %v1363, %v1362
      %1368 = vmatprep.subr.bf16.mxu0 0
      %1369 = vmatpush1.bf16.msra.mxu0 %v1364
      %1370 = vmatprep.subr.bf16.mxu0 0
      %1371 = vmatpush1.bf16.msra.mxu0 %v1365
      %1372 = vmatprep.subr.bf16.mxu0 0
      %1373 = vmatpush1.bf16.msra.mxu0 0
      %1374 = vmatprep.subr.bf16.mxu0 0
      %1375 = vmatpush1.bf16.msra.mxu0 0
      %1376 = vmatprep.subr.bf16.mxu0 0
      %1377 = vmatpush1.bf16.msra.mxu0 0
      %1378 = vmatprep.subr.bf16.mxu0 0
      %1379 = vmatpush1.bf16.msra.mxu0 0
      %1380 = vmatprep.subr.bf16.mxu0 0
      %1381 = vmatpush1.bf16.msra.mxu0 0
      %1382 = vmatprep.subr.bf16.mxu0 0
      %1383 = vmatpush1.bf16.msra.mxu0 0
      %1384 = vmatprep.subr.bf16.mxu0 0
      %1385 = vmatpush1.bf16.msra.mxu0 0
      %1386 = vmatprep.subr.bf16.mxu0 0
      %1387 = vmatpush1.bf16.msra.mxu0 0
      %1388 = vmatprep.subr.bf16.mxu0 0
      %1389 = vmatpush1.bf16.msra.mxu0 0
      %1390 = vmatprep.subr.bf16.mxu0 0
      %1391 = vmatpush1.bf16.msra.mxu0 0
      %1392 = vmatprep.subr.bf16.mxu0 0
      %1393 = vmatpush1.bf16.msra.mxu0 0
      %1394 = vmatprep.subr.bf16.mxu0 0
      %1395 = vmatpush1.bf16.msra.mxu0 0
      %1396 = vmatprep.subr.bf16.mxu0 0
      %1397 = vmatpush1.bf16.msra.mxu0 0
      %1398 = vmatprep.subr.bf16.mxu0 0
      %1399 = vmatpush1.bf16.msra.mxu0 0
      %1400 = vmatprep.mubr.bf16.mxu0 0
      %1401 = vmatmul.mubr.bf16.gmra.mrb[0].mxu0 %v633
      %v1402 = vpop.f32.mrb[0].mxu0
      %v1403 = vadd.f32 0.0, %v1402
      %v1404 = vpop.f32.mrb[0].mxu0
      %v1405 = vpop.f32.mrb[0].mxu0
      %v1406 = vadd.f32 0.0, %v1405
      %v1407 = vpop.f32.mrb[0].mxu0
      %1408 = vdwg.mxu0
      %v1413 = vunpack.c.l.b16 %v1246
      %v1414 = vunpack.c.l.b16 %v1247
      %v1415 = vunpack.c.l.b16 %v1248
      %v1416 = vunpack.c.l.b16 %v1249
      %v1417 = vpack.c.b16 %v1414, %v1413
      %v1418 = vpack.c.b16 %v1416, %v1415
      %1421 = vmatprep.subr.bf16.mxu0 0
      %1422 = vmatpush1.bf16.msra.mxu0 %v1417
      %1423 = vmatprep.subr.bf16.mxu0 0
      %1424 = vmatpush1.bf16.msra.mxu0 %v1418
      %1425 = vmatprep.subr.bf16.mxu0 0
      %1426 = vmatpush1.bf16.msra.mxu0 0
      %1427 = vmatprep.subr.bf16.mxu0 0
      %1428 = vmatpush1.bf16.msra.mxu0 0
      %1429 = vmatprep.subr.bf16.mxu0 0
      %1430 = vmatpush1.bf16.msra.mxu0 0
      %1431 = vmatprep.subr.bf16.mxu0 0
      %1432 = vmatpush1.bf16.msra.mxu0 0
      %1433 = vmatprep.subr.bf16.mxu0 0
      %1434 = vmatpush1.bf16.msra.mxu0 0
      %1435 = vmatprep.subr.bf16.mxu0 0
      %1436 = vmatpush1.bf16.msra.mxu0 0
      %1437 = vmatprep.subr.bf16.mxu0 0
      %1438 = vmatpush1.bf16.msra.mxu0 0
      %1439 = vmatprep.subr.bf16.mxu0 0
      %1440 = vmatpush1.bf16.msra.mxu0 0
      %1441 = vmatprep.subr.bf16.mxu0 0
      %1442 = vmatpush1.bf16.msra.mxu0 0
      %1443 = vmatprep.subr.bf16.mxu0 0
      %1444 = vmatpush1.bf16.msra.mxu0 0
      %1445 = vmatprep.subr.bf16.mxu0 0
      %1446 = vmatpush1.bf16.msra.mxu0 0
      %1447 = vmatprep.subr.bf16.mxu0 0
      %1448 = vmatpush1.bf16.msra.mxu0 0
      %1449 = vmatprep.subr.bf16.mxu0 0
      %1450 = vmatpush1.bf16.msra.mxu0 0
      %1451 = vmatprep.subr.bf16.mxu0 0
      %1452 = vmatpush1.bf16.msra.mxu0 0
      %1453 = vmatprep.mubr.bf16.mxu0 0
      %1454 = vmatmul.mubr.bf16.gmra.mrb[0].mxu0 %v633
      %v1455 = vpop.f32.mrb[0].mxu0
      %v1456 = vadd.f32 0.0, %v1455
      %v1457 = vpop.f32.mrb[0].mxu0
      %v1458 = vpop.f32.mrb[0].mxu0
      %v1459 = vadd.f32 0.0, %v1458
      %v1460 = vpop.f32.mrb[0].mxu0
      %1461 = vdwg.mxu0
      %v1462 = vpack.c.bf16 %v842, %v839
      %v1463 = vpack.c.bf16 %v895, %v892
      %v1464 = vpack.c.bf16 %v948, %v945
      %v1465 = vpack.c.bf16 %v1001, %v998
      %v1466 = vpack.c.bf16 %v1071, %v1068
      %v1467 = vpack.c.bf16 %v1124, %v1121
      %v1468 = vpack.c.bf16 %v1177, %v1174
      %v1469 = vpack.c.bf16 %v1230, %v1227
      %vm1470 = vcmask 64512
      %v1472 = vsel %vm1470, %v1462, 0
      %v1475 = vsel %vm1470, %v1466, 0
      %1477 = vmatprep.subr.bf16.mxu0 0
      %1478 = vmatpush1.bf16.xpose.msra.mxu0 %v1475
      %1479 = vmatprep.subr.bf16.mxu0 0
      %1480 = vmatpush1.bf16.xpose.msra.mxu0 0
      %1481 = vmatprep.subr.bf16.mxu0 0
      %1482 = vmatpush1.bf16.xpose.msra.mxu0 0
      %1483 = vmatprep.subr.bf16.mxu0 0
      %1484 = vmatpush1.bf16.xpose.msra.mxu0 0
      %1485 = vmatprep.subr.bf16.mxu0 0
      %1486 = vmatpush1.bf16.xpose.msra.mxu0 0
      %1487 = vmatprep.subr.bf16.mxu0 0
      %1488 = vmatpush1.bf16.xpose.msra.mxu0 0
      %1489 = vmatprep.subr.bf16.mxu0 0
      %1490 = vmatpush1.bf16.xpose.msra.mxu0 0
      %1491 = vmatprep.subr.bf16.mxu0 0
      %1492 = vmatpush1.bf16.xpose.msra.mxu0 0
      %1493 = vmatprep.subr.bf16.mxu0 0
      %1494 = vmatpush1.bf16.xpose.msra.mxu0 0
      %1495 = vmatprep.subr.bf16.mxu0 0
      %1496 = vmatpush1.bf16.xpose.msra.mxu0 0
      %1497 = vmatprep.subr.bf16.mxu0 0
      %1498 = vmatpush1.bf16.xpose.msra.mxu0 0
      %1499 = vmatprep.subr.bf16.mxu0 0
      %1500 = vmatpush1.bf16.xpose.msra.mxu0 0
      %1501 = vmatprep.subr.bf16.mxu0 0
      %1502 = vmatpush1.bf16.xpose.msra.mxu0 0
      %1503 = vmatprep.subr.bf16.mxu0 0
      %1504 = vmatpush1.bf16.xpose.msra.mxu0 0
      %1505 = vmatprep.subr.bf16.mxu0 0
      %1506 = vmatpush1.bf16.xpose.msra.mxu0 0
      %1507 = vmatprep.subr.bf16.mxu0 0
      %1508 = vmatpush1.bf16.xpose.msra.mxu0 0
      %1509 = vmatprep.mubr.bf16.mxu0 0
      %1510 = vmatmul.mubr.bf16.gmra.mrb[0].mxu0 %v1472
      %v1511 = vpop.f32.mrb[0].mxu0
      %v1512 = vadd.f32 0.0, %v1511
      %v1513 = vpop.f32.mrb[0].mxu0
      %v1514 = vpop.f32.mrb[0].mxu0
      %v1515 = vadd.f32 0.0, %v1514
      %v1516 = vpop.f32.mrb[0].mxu0
      %1517 = vdwg.mxu0
      %v1519 = vsel %vm1470, %v1463, 0
      %v1522 = vsel %vm1470, %v1467, 0
      %1524 = vmatprep.subr.bf16.mxu0 0
      %1525 = vmatpush1.bf16.xpose.msra.mxu0 %v1522
      %1526 = vmatprep.subr.bf16.mxu0 0
      %1527 = vmatpush1.bf16.xpose.msra.mxu0 0
      %1528 = vmatprep.subr.bf16.mxu0 0
      %1529 = vmatpush1.bf16.xpose.msra.mxu0 0
      %1530 = vmatprep.subr.bf16.mxu0 0
      %1531 = vmatpush1.bf16.xpose.msra.mxu0 0
      %1532 = vmatprep.subr.bf16.mxu0 0
      %1533 = vmatpush1.bf16.xpose.msra.mxu0 0
      %1534 = vmatprep.subr.bf16.mxu0 0
      %1535 = vmatpush1.bf16.xpose.msra.mxu0 0
      %1536 = vmatprep.subr.bf16.mxu0 0
      %1537 = vmatpush1.bf16.xpose.msra.mxu0 0
      %1538 = vmatprep.subr.bf16.mxu0 0
      %1539 = vmatpush1.bf16.xpose.msra.mxu0 0
      %1540 = vmatprep.subr.bf16.mxu0 0
      %1541 = vmatpush1.bf16.xpose.msra.mxu0 0
      %1542 = vmatprep.subr.bf16.mxu0 0
      %1543 = vmatpush1.bf16.xpose.msra.mxu0 0
      %1544 = vmatprep.subr.bf16.mxu0 0
      %1545 = vmatpush1.bf16.xpose.msra.mxu0 0
      %1546 = vmatprep.subr.bf16.mxu0 0
      %1547 = vmatpush1.bf16.xpose.msra.mxu0 0
      %1548 = vmatprep.subr.bf16.mxu0 0
      %1549 = vmatpush1.bf16.xpose.msra.mxu0 0
      %1550 = vmatprep.subr.bf16.mxu0 0
      %1551 = vmatpush1.bf16.xpose.msra.mxu0 0
      %1552 = vmatprep.subr.bf16.mxu0 0
      %1553 = vmatpush1.bf16.xpose.msra.mxu0 0
      %1554 = vmatprep.subr.bf16.mxu0 0
      %1555 = vmatpush1.bf16.xpose.msra.mxu0 0
      %1556 = vmatprep.mubr.bf16.mxu0 0
      %1557 = vmatmul.mubr.bf16.gmra.mrb[0].mxu0 %v1519
      %v1558 = vpop.f32.mrb[0].mxu0
      %v1559 = vadd.f32 0.0, %v1558
      %v1560 = vpop.f32.mrb[0].mxu0
      %v1561 = vpop.f32.mrb[0].mxu0
      %v1562 = vadd.f32 0.0, %v1561
      %v1563 = vpop.f32.mrb[0].mxu0
      %1564 = vdwg.mxu0
      %v1566 = vsel %vm1470, %v1464, 0
      %v1569 = vsel %vm1470, %v1468, 0
      %1571 = vmatprep.subr.bf16.mxu0 0
      %1572 = vmatpush1.bf16.xpose.msra.mxu0 %v1569
      %1573 = vmatprep.subr.bf16.mxu0 0
      %1574 = vmatpush1.bf16.xpose.msra.mxu0 0
      %1575 = vmatprep.subr.bf16.mxu0 0
      %1576 = vmatpush1.bf16.xpose.msra.mxu0 0
      %1577 = vmatprep.subr.bf16.mxu0 0
      %1578 = vmatpush1.bf16.xpose.msra.mxu0 0
      %1579 = vmatprep.subr.bf16.mxu0 0
      %1580 = vmatpush1.bf16.xpose.msra.mxu0 0
      %1581 = vmatprep.subr.bf16.mxu0 0
      %1582 = vmatpush1.bf16.xpose.msra.mxu0 0
      %1583 = vmatprep.subr.bf16.mxu0 0
      %1584 = vmatpush1.bf16.xpose.msra.mxu0 0
      %1585 = vmatprep.subr.bf16.mxu0 0
      %1586 = vmatpush1.bf16.xpose.msra.mxu0 0
      %1587 = vmatprep.subr.bf16.mxu0 0
      %1588 = vmatpush1.bf16.xpose.msra.mxu0 0
      %1589 = vmatprep.subr.bf16.mxu0 0
      %1590 = vmatpush1.bf16.xpose.msra.mxu0 0
      %1591 = vmatprep.subr.bf16.mxu0 0
      %1592 = vmatpush1.bf16.xpose.msra.mxu0 0
      %1593 = vmatprep.subr.bf16.mxu0 0
      %1594 = vmatpush1.bf16.xpose.msra.mxu0 0
      %1595 = vmatprep.subr.bf16.mxu0 0
      %1596 = vmatpush1.bf16.xpose.msra.mxu0 0
      %1597 = vmatprep.subr.bf16.mxu0 0
      %1598 = vmatpush1.bf16.xpose.msra.mxu0 0
      %1599 = vmatprep.subr.bf16.mxu0 0
      %1600 = vmatpush1.bf16.xpose.msra.mxu0 0
      %1601 = vmatprep.subr.bf16.mxu0 0
      %1602 = vmatpush1.bf16.xpose.msra.mxu0 0
      %1603 = vmatprep.mubr.bf16.mxu0 0
      %1604 = vmatmul.mubr.bf16.gmra.mrb[0].mxu0 %v1566
      %v1605 = vpop.f32.mrb[0].mxu0
      %v1606 = vadd.f32 0.0, %v1605
      %v1607 = vpop.f32.mrb[0].mxu0
      %v1608 = vpop.f32.mrb[0].mxu0
      %v1609 = vadd.f32 0.0, %v1608
      %v1610 = vpop.f32.mrb[0].mxu0
      %1611 = vdwg.mxu0
      %v1613 = vsel %vm1470, %v1465, 0
      %v1616 = vsel %vm1470, %v1469, 0
      %1618 = vmatprep.subr.bf16.mxu0 0
      %1619 = vmatpush1.bf16.xpose.msra.mxu0 %v1616
      %1620 = vmatprep.subr.bf16.mxu0 0
      %1621 = vmatpush1.bf16.xpose.msra.mxu0 0
      %1622 = vmatprep.subr.bf16.mxu0 0
      %1623 = vmatpush1.bf16.xpose.msra.mxu0 0
      %1624 = vmatprep.subr.bf16.mxu0 0
      %1625 = vmatpush1.bf16.xpose.msra.mxu0 0
      %1626 = vmatprep.subr.bf16.mxu0 0
      %1627 = vmatpush1.bf16.xpose.msra.mxu0 0
      %1628 = vmatprep.subr.bf16.mxu0 0
      %1629 = vmatpush1.bf16.xpose.msra.mxu0 0
      %1630 = vmatprep.subr.bf16.mxu0 0
      %1631 = vmatpush1.bf16.xpose.msra.mxu0 0
      %1632 = vmatprep.subr.bf16.mxu0 0
      %1633 = vmatpush1.bf16.xpose.msra.mxu0 0
      %1634 = vmatprep.subr.bf16.mxu0 0
      %1635 = vmatpush1.bf16.xpose.msra.mxu0 0
      %1636 = vmatprep.subr.bf16.mxu0 0
      %1637 = vmatpush1.bf16.xpose.msra.mxu0 0
      %1638 = vmatprep.subr.bf16.mxu0 0
      %1639 = vmatpush1.bf16.xpose.msra.mxu0 0
      %1640 = vmatprep.subr.bf16.mxu0 0
      %1641 = vmatpush1.bf16.xpose.msra.mxu0 0
      %1642 = vmatprep.subr.bf16.mxu0 0
      %1643 = vmatpush1.bf16.xpose.msra.mxu0 0
      %1644 = vmatprep.subr.bf16.mxu0 0
      %1645 = vmatpush1.bf16.xpose.msra.mxu0 0
      %1646 = vmatprep.subr.bf16.mxu0 0
      %1647 = vmatpush1.bf16.xpose.msra.mxu0 0
      %1648 = vmatprep.subr.bf16.mxu0 0
      %1649 = vmatpush1.bf16.xpose.msra.mxu0 0
      %1650 = vmatprep.mubr.bf16.mxu0 0
      %1651 = vmatmul.mubr.bf16.gmra.mrb[0].mxu0 %v1613
      %v1652 = vpop.f32.mrb[0].mxu0
      %v1653 = vadd.f32 0.0, %v1652
      %v1654 = vpop.f32.mrb[0].mxu0
      %v1655 = vpop.f32.mrb[0].mxu0
      %v1656 = vadd.f32 0.0, %v1655
      %v1657 = vpop.f32.mrb[0].mxu0
      %1658 = vdwg.mxu0
      %v1659 = vmul.f32 %v1512, 0.35355338
      %v1660 = vmul.f32 %v1515, 0.35355338
      %v1661 = vmul.f32 %v1559, 0.35355338
      %v1662 = vmul.f32 %v1562, 0.35355338
      %v1663 = vmul.f32 %v1606, 0.35355338
      %v1664 = vmul.f32 %v1609, 0.35355338
      %v1665 = vmul.f32 %v1653, 0.35355338
      %v1666 = vmul.f32 %v1656, 0.35355338
      %v1667 = vsel %vm688, %v1659, -inf
      %1668 = vmax.xlane.f32.xlu0 %v1667
      %v1669 = vpop.xlane.xlu0 %1668
      %v1670 = vsel %vm688, %v1660, -inf
      %1671 = vmax.xlane.f32.xlu0 %v1670
      %v1672 = vpop.xlane.xlu0 %1671
      %v1673 = vsel %vm688, %v1661, -inf
      %1674 = vmax.xlane.f32.xlu0 %v1673
      %v1675 = vpop.xlane.xlu0 %1674
      %v1676 = vsel %vm688, %v1662, -inf
      %1677 = vmax.xlane.f32.xlu0 %v1676
      %v1678 = vpop.xlane.xlu0 %1677
      %v1679 = vsel %vm688, %v1663, -inf
      %1680 = vmax.xlane.f32.xlu0 %v1679
      %v1681 = vpop.xlane.xlu0 %1680
      %v1682 = vsel %vm688, %v1664, -inf
      %1683 = vmax.xlane.f32.xlu0 %v1682
      %v1684 = vpop.xlane.xlu0 %1683
      %v1685 = vsel %vm688, %v1665, -inf
      %1686 = vmax.xlane.f32.xlu0 %v1685
      %v1687 = vpop.xlane.xlu0 %1686
      %v1688 = vsel %vm688, %v1666, -inf
      %1689 = vmax.xlane.f32.xlu0 %v1688
      %v1690 = vpop.xlane.xlu0 %1689
      %v1691 = vsub.f32 %v1659, %v1669
      %v1692 = vsub.f32 %v1660, %v1672
      %v1693 = vsub.f32 %v1661, %v1675
      %v1694 = vsub.f32 %v1662, %v1678
      %v1695 = vsub.f32 %v1663, %v1681
      %v1696 = vsub.f32 %v1664, %v1684
      %v1697 = vsub.f32 %v1665, %v1687
      %v1698 = vsub.f32 %v1666, %v1690
      %v1699 = vmul.f32 %v1691, 1.442695
      %v1700 = vpow.pop %v1699
      %v1701 = vmul.f32 %v1692, 1.442695
      %v1702 = vpow.pop %v1701
      %v1703 = vmul.f32 %v1693, 1.442695
      %v1704 = vpow.pop %v1703
      %v1705 = vmul.f32 %v1694, 1.442695
      %v1706 = vpow.pop %v1705
      %v1707 = vmul.f32 %v1695, 1.442695
      %v1708 = vpow.pop %v1707
      %v1709 = vmul.f32 %v1696, 1.442695
      %v1710 = vpow.pop %v1709
      %v1711 = vmul.f32 %v1697, 1.442695
      %v1712 = vpow.pop %v1711
      %v1713 = vmul.f32 %v1698, 1.442695
      %v1714 = vpow.pop %v1713
      %v1715 = vsel %vm688, %v1700, 0.0
      %1716 = vadd.xlane.f32.xlu0 %v1715
      %v1717 = vpop.xlane.xlu0 %1716
      %v1718 = vsel %vm688, %v1702, 0.0
      %1719 = vadd.xlane.f32.xlu0 %v1718
      %v1720 = vpop.xlane.xlu0 %1719
      %v1721 = vsel %vm688, %v1704, 0.0
      %1722 = vadd.xlane.f32.xlu0 %v1721
      %v1723 = vpop.xlane.xlu0 %1722
      %v1724 = vsel %vm688, %v1706, 0.0
      %1725 = vadd.xlane.f32.xlu0 %v1724
      %v1726 = vpop.xlane.xlu0 %1725
      %v1727 = vsel %vm688, %v1708, 0.0
      %1728 = vadd.xlane.f32.xlu0 %v1727
      %v1729 = vpop.xlane.xlu0 %1728
      %v1730 = vsel %vm688, %v1710, 0.0
      %1731 = vadd.xlane.f32.xlu0 %v1730
      %v1732 = vpop.xlane.xlu0 %1731
      %v1733 = vsel %vm688, %v1712, 0.0
      %1734 = vadd.xlane.f32.xlu0 %v1733
      %v1735 = vpop.xlane.xlu0 %1734
      %v1736 = vsel %vm688, %v1714, 0.0
      %1737 = vadd.xlane.f32.xlu0 %v1736
      %v1738 = vpop.xlane.xlu0 %1737
      %v1739 = vrcp.pop %v1717
      %v1740 = vrcp.pop %v1720
      %v1741 = vrcp.pop %v1723
      %v1742 = vrcp.pop %v1726
      %v1743 = vrcp.pop %v1729
      %v1744 = vrcp.pop %v1732
      %v1745 = vrcp.pop %v1735
      %v1746 = vrcp.pop %v1738
      %v1747 = vmul.f32 %v1700, %v1739
      %v1748 = vmul.f32 %v1702, %v1740
      %v1749 = vmul.f32 %v1704, %v1741
      %v1750 = vmul.f32 %v1706, %v1742
      %v1751 = vmul.f32 %v1708, %v1743
      %v1752 = vmul.f32 %v1710, %v1744
      %v1753 = vmul.f32 %v1712, %v1745
      %v1754 = vmul.f32 %v1714, %v1746
      %v1755 = vpack.c.bf16 %v1748, %v1747
      %v1756 = vpack.c.bf16 %v1750, %v1749
      %v1757 = vpack.c.bf16 %v1752, %v1751
      %v1758 = vpack.c.bf16 %v1754, %v1753
      %v1759 = vpack.c.bf16 %v1300, %v1297
      %v1760 = vpack.c.bf16 %v1353, %v1350
      %v1761 = vpack.c.bf16 %v1406, %v1403
      %v1762 = vpack.c.bf16 %v1459, %v1456
      %v1764 = vsel %vm688, %v1755, 0
      %1766 = vmatprep.subr.bf16.mxu0 0
      %1767 = vmatpush1.bf16.msra.mxu0 %v1759
      %1768 = vmatprep.subr.bf16.mxu0 0
      %1769 = vmatpush1.bf16.msra.mxu0 0
      %1770 = vmatprep.subr.bf16.mxu0 0
      %1771 = vmatpush1.bf16.msra.mxu0 0
      %1772 = vmatprep.subr.bf16.mxu0 0
      %1773 = vmatpush1.bf16.msra.mxu0 0
      %1774 = vmatprep.subr.bf16.mxu0 0
      %1775 = vmatpush1.bf16.msra.mxu0 0
      %1776 = vmatprep.subr.bf16.mxu0 0
      %1777 = vmatpush1.bf16.msra.mxu0 0
      %1778 = vmatprep.subr.bf16.mxu0 0
      %1779 = vmatpush1.bf16.msra.mxu0 0
      %1780 = vmatprep.subr.bf16.mxu0 0
      %1781 = vmatpush1.bf16.msra.mxu0 0
      %1782 = vmatprep.subr.bf16.mxu0 0
      %1783 = vmatpush1.bf16.msra.mxu0 0
      %1784 = vmatprep.subr.bf16.mxu0 0
      %1785 = vmatpush1.bf16.msra.mxu0 0
      %1786 = vmatprep.subr.bf16.mxu0 0
      %1787 = vmatpush1.bf16.msra.mxu0 0
      %1788 = vmatprep.subr.bf16.mxu0 0
      %1789 = vmatpush1.bf16.msra.mxu0 0
      %1790 = vmatprep.subr.bf16.mxu0 0
      %1791 = vmatpush1.bf16.msra.mxu0 0
      %1792 = vmatprep.subr.bf16.mxu0 0
      %1793 = vmatpush1.bf16.msra.mxu0 0
      %1794 = vmatprep.subr.bf16.mxu0 0
      %1795 = vmatpush1.bf16.msra.mxu0 0
      %1796 = vmatprep.subr.bf16.mxu0 0
      %1797 = vmatpush1.bf16.msra.mxu0 0
      %1798 = vmatprep.mubr.bf16.mxu0 0
      %1799 = vmatmul.mubr.bf16.gmra.mrb[0].mxu0 %v1764
      %v1800 = vpop.f32.mrb[0].mxu0
      %v1801 = vadd.f32 0.0, %v1800
      %v1802 = vpop.f32.mrb[0].mxu0
      %v1803 = vpop.f32.mrb[0].mxu0
      %v1804 = vadd.f32 0.0, %v1803
      %v1805 = vpop.f32.mrb[0].mxu0
      %1806 = vdwg.mxu0
      %v1808 = vsel %vm688, %v1756, 0
      %1810 = vmatprep.subr.bf16.mxu0 0
      %1811 = vmatpush1.bf16.msra.mxu0 %v1760
      %1812 = vmatprep.subr.bf16.mxu0 0
      %1813 = vmatpush1.bf16.msra.mxu0 0
      %1814 = vmatprep.subr.bf16.mxu0 0
      %1815 = vmatpush1.bf16.msra.mxu0 0
      %1816 = vmatprep.subr.bf16.mxu0 0
      %1817 = vmatpush1.bf16.msra.mxu0 0
      %1818 = vmatprep.subr.bf16.mxu0 0
      %1819 = vmatpush1.bf16.msra.mxu0 0
      %1820 = vmatprep.subr.bf16.mxu0 0
      %1821 = vmatpush1.bf16.msra.mxu0 0
      %1822 = vmatprep.subr.bf16.mxu0 0
      %1823 = vmatpush1.bf16.msra.mxu0 0
      %1824 = vmatprep.subr.bf16.mxu0 0
      %1825 = vmatpush1.bf16.msra.mxu0 0
      %1826 = vmatprep.subr.bf16.mxu0 0
      %1827 = vmatpush1.bf16.msra.mxu0 0
      %1828 = vmatprep.subr.bf16.mxu0 0
      %1829 = vmatpush1.bf16.msra.mxu0 0
      %1830 = vmatprep.subr.bf16.mxu0 0
      %1831 = vmatpush1.bf16.msra.mxu0 0
      %1832 = vmatprep.subr.bf16.mxu0 0
      %1833 = vmatpush1.bf16.msra.mxu0 0
      %1834 = vmatprep.subr.bf16.mxu0 0
      %1835 = vmatpush1.bf16.msra.mxu0 0
      %1836 = vmatprep.subr.bf16.mxu0 0
      %1837 = vmatpush1.bf16.msra.mxu0 0
      %1838 = vmatprep.subr.bf16.mxu0 0
      %1839 = vmatpush1.bf16.msra.mxu0 0
      %1840 = vmatprep.subr.bf16.mxu0 0
      %1841 = vmatpush1.bf16.msra.mxu0 0
      %1842 = vmatprep.mubr.bf16.mxu0 0
      %1843 = vmatmul.mubr.bf16.gmra.mrb[0].mxu0 %v1808
      %v1844 = vpop.f32.mrb[0].mxu0
      %v1845 = vadd.f32 0.0, %v1844
      %v1846 = vpop.f32.mrb[0].mxu0
      %v1847 = vpop.f32.mrb[0].mxu0
      %v1848 = vadd.f32 0.0, %v1847
      %v1849 = vpop.f32.mrb[0].mxu0
      %1850 = vdwg.mxu0
      %v1852 = vsel %vm688, %v1757, 0
      %1854 = vmatprep.subr.bf16.mxu0 0
      %1855 = vmatpush1.bf16.msra.mxu0 %v1761
      %1856 = vmatprep.subr.bf16.mxu0 0
      %1857 = vmatpush1.bf16.msra.mxu0 0
      %1858 = vmatprep.subr.bf16.mxu0 0
      %1859 = vmatpush1.bf16.msra.mxu0 0
      %1860 = vmatprep.subr.bf16.mxu0 0
      %1861 = vmatpush1.bf16.msra.mxu0 0
      %1862 = vmatprep.subr.bf16.mxu0 0
      %1863 = vmatpush1.bf16.msra.mxu0 0
      %1864 = vmatprep.subr.bf16.mxu0 0
      %1865 = vmatpush1.bf16.msra.mxu0 0
      %1866 = vmatprep.subr.bf16.mxu0 0
      %1867 = vmatpush1.bf16.msra.mxu0 0
      %1868 = vmatprep.subr.bf16.mxu0 0
      %1869 = vmatpush1.bf16.msra.mxu0 0
      %1870 = vmatprep.subr.bf16.mxu0 0
      %1871 = vmatpush1.bf16.msra.mxu0 0
      %1872 = vmatprep.subr.bf16.mxu0 0
      %1873 = vmatpush1.bf16.msra.mxu0 0
      %1874 = vmatprep.subr.bf16.mxu0 0
      %1875 = vmatpush1.bf16.msra.mxu0 0
      %1876 = vmatprep.subr.bf16.mxu0 0
      %1877 = vmatpush1.bf16.msra.mxu0 0
      %1878 = vmatprep.subr.bf16.mxu0 0
      %1879 = vmatpush1.bf16.msra.mxu0 0
      %1880 = vmatprep.subr.bf16.mxu0 0
      %1881 = vmatpush1.bf16.msra.mxu0 0
      %1882 = vmatprep.subr.bf16.mxu0 0
      %1883 = vmatpush1.bf16.msra.mxu0 0
      %1884 = vmatprep.subr.bf16.mxu0 0
      %1885 = vmatpush1.bf16.msra.mxu0 0
      %1886 = vmatprep.mubr.bf16.mxu0 0
      %1887 = vmatmul.mubr.bf16.gmra.mrb[0].mxu0 %v1852
      %v1888 = vpop.f32.mrb[0].mxu0
      %v1889 = vadd.f32 0.0, %v1888
      %v1890 = vpop.f32.mrb[0].mxu0
      %v1891 = vpop.f32.mrb[0].mxu0
      %v1892 = vadd.f32 0.0, %v1891
      %v1893 = vpop.f32.mrb[0].mxu0
      %1894 = vdwg.mxu0
      %v1896 = vsel %vm688, %v1758, 0
      %1898 = vmatprep.subr.bf16.mxu0 0
      %1899 = vmatpush1.bf16.msra.mxu0 %v1762
      %1900 = vmatprep.subr.bf16.mxu0 0
      %1901 = vmatpush1.bf16.msra.mxu0 0
      %1902 = vmatprep.subr.bf16.mxu0 0
      %1903 = vmatpush1.bf16.msra.mxu0 0
      %1904 = vmatprep.subr.bf16.mxu0 0
      %1905 = vmatpush1.bf16.msra.mxu0 0
      %1906 = vmatprep.subr.bf16.mxu0 0
      %1907 = vmatpush1.bf16.msra.mxu0 0
      %1908 = vmatprep.subr.bf16.mxu0 0
      %1909 = vmatpush1.bf16.msra.mxu0 0
      %1910 = vmatprep.subr.bf16.mxu0 0
      %1911 = vmatpush1.bf16.msra.mxu0 0
      %1912 = vmatprep.subr.bf16.mxu0 0
      %1913 = vmatpush1.bf16.msra.mxu0 0
      %1914 = vmatprep.subr.bf16.mxu0 0
      %1915 = vmatpush1.bf16.msra.mxu0 0
      %1916 = vmatprep.subr.bf16.mxu0 0
      %1917 = vmatpush1.bf16.msra.mxu0 0
      %1918 = vmatprep.subr.bf16.mxu0 0
      %1919 = vmatpush1.bf16.msra.mxu0 0
      %1920 = vmatprep.subr.bf16.mxu0 0
      %1921 = vmatpush1.bf16.msra.mxu0 0
      %1922 = vmatprep.subr.bf16.mxu0 0
      %1923 = vmatpush1.bf16.msra.mxu0 0
      %1924 = vmatprep.subr.bf16.mxu0 0
      %1925 = vmatpush1.bf16.msra.mxu0 0
      %1926 = vmatprep.subr.bf16.mxu0 0
      %1927 = vmatpush1.bf16.msra.mxu0 0
      %1928 = vmatprep.subr.bf16.mxu0 0
      %1929 = vmatpush1.bf16.msra.mxu0 0
      %1930 = vmatprep.mubr.bf16.mxu0 0
      %1931 = vmatmul.mubr.bf16.gmra.mrb[0].mxu0 %v1896
      %v1932 = vpop.f32.mrb[0].mxu0
      %v1933 = vadd.f32 0.0, %v1932
      %v1934 = vpop.f32.mrb[0].mxu0
      %v1935 = vpop.f32.mrb[0].mxu0
      %v1936 = vadd.f32 0.0, %v1935
      %v1937 = vpop.f32.mrb[0].mxu0
      %1938 = vdwg.mxu0
      %v1939 = vpack.c.bf16 %v1804, %v1801
      %v1940 = vpack.c.bf16 %v1848, %v1845
      %v1941 = vpack.c.bf16 %v1892, %v1889
      %v1942 = vpack.c.bf16 %v1936, %v1933
      %v1943 = vld [vmem:[%s521] sm:$0xf]
      %v1944 = vld [vmem:[%s521 + $0x4] sm:$0xf]
      %v1945 = vld [vmem:[%s521 + $0x8] sm:$0xf]
      %v1946 = vld [vmem:[%s521 + $0xc] sm:$0xf]
      %v1948 = vsel %vm1470, %v1939, 0
      %vm1950 = vcmask 1043456
      %v1952 = vsel %vm1950, %v1943, 0
      %1954 = vmatprep.subr.bf16.mxu0 0
      %1955 = vmatpush1.bf16.msra.mxu0 %v1952
      %1956 = vmatprep.subr.bf16.mxu0 0
      %1957 = vmatpush1.bf16.msra.mxu0 0
      %1958 = vmatprep.subr.bf16.mxu0 0
      %1959 = vmatpush1.bf16.msra.mxu0 0
      %1960 = vmatprep.subr.bf16.mxu0 0
      %1961 = vmatpush1.bf16.msra.mxu0 0
      %1962 = vmatprep.subr.bf16.mxu0 0
      %1963 = vmatpush1.bf16.msra.mxu0 0
      %1964 = vmatprep.subr.bf16.mxu0 0
      %1965 = vmatpush1.bf16.msra.mxu0 0
      %1966 = vmatprep.subr.bf16.mxu0 0
      %1967 = vmatpush1.bf16.msra.mxu0 0
      %1968 = vmatprep.subr.bf16.mxu0 0
      %1969 = vmatpush1.bf16.msra.mxu0 0
      %1970 = vmatprep.subr.bf16.mxu0 0
      %1971 = vmatpush1.bf16.msra.mxu0 0
      %1972 = vmatprep.subr.bf16.mxu0 0
      %1973 = vmatpush1.bf16.msra.mxu0 0
      %1974 = vmatprep.subr.bf16.mxu0 0
      %1975 = vmatpush1.bf16.msra.mxu0 0
      %1976 = vmatprep.subr.bf16.mxu0 0
      %1977 = vmatpush1.bf16.msra.mxu0 0
      %1978 = vmatprep.subr.bf16.mxu0 0
      %1979 = vmatpush1.bf16.msra.mxu0 0
      %1980 = vmatprep.subr.bf16.mxu0 0
      %1981 = vmatpush1.bf16.msra.mxu0 0
      %1982 = vmatprep.subr.bf16.mxu0 0
      %1983 = vmatpush1.bf16.msra.mxu0 0
      %1984 = vmatprep.subr.bf16.mxu0 0
      %1985 = vmatpush1.bf16.msra.mxu0 0
      %1986 = vmatprep.mubr.bf16.mxu0 0
      %1987 = vmatmul.mubr.bf16.gmra.mrb[0].mxu0 %v1948
      %v1988 = vpop.f32.mrb[0].mxu0
      %v1989 = vadd.f32 0.0, %v1988
      %v1990 = vpop.f32.mrb[0].mxu0
      %v1991 = vpop.f32.mrb[0].mxu0
      %v1992 = vadd.f32 0.0, %v1991
      %v1993 = vpop.f32.mrb[0].mxu0
      %1994 = vdwg.mxu0
      %v1996 = vsel %vm1470, %v1940, 0
      %v1999 = vsel %vm1950, %v1944, 0
      %2001 = vmatprep.subr.bf16.mxu0 0
      %2002 = vmatpush1.bf16.msra.mxu0 %v1999
      %2003 = vmatprep.subr.bf16.mxu0 0
      %2004 = vmatpush1.bf16.msra.mxu0 0
      %2005 = vmatprep.subr.bf16.mxu0 0
      %2006 = vmatpush1.bf16.msra.mxu0 0
      %2007 = vmatprep.subr.bf16.mxu0 0
      %2008 = vmatpush1.bf16.msra.mxu0 0
      %2009 = vmatprep.subr.bf16.mxu0 0
      %2010 = vmatpush1.bf16.msra.mxu0 0
      %2011 = vmatprep.subr.bf16.mxu0 0
      %2012 = vmatpush1.bf16.msra.mxu0 0
      %2013 = vmatprep.subr.bf16.mxu0 0
      %2014 = vmatpush1.bf16.msra.mxu0 0
      %2015 = vmatprep.subr.bf16.mxu0 0
      %2016 = vmatpush1.bf16.msra.mxu0 0
      %2017 = vmatprep.subr.bf16.mxu0 0
      %2018 = vmatpush1.bf16.msra.mxu0 0
      %2019 = vmatprep.subr.bf16.mxu0 0
      %2020 = vmatpush1.bf16.msra.mxu0 0
      %2021 = vmatprep.subr.bf16.mxu0 0
      %2022 = vmatpush1.bf16.msra.mxu0 0
      %2023 = vmatprep.subr.bf16.mxu0 0
      %2024 = vmatpush1.bf16.msra.mxu0 0
      %2025 = vmatprep.subr.bf16.mxu0 0
      %2026 = vmatpush1.bf16.msra.mxu0 0
      %2027 = vmatprep.subr.bf16.mxu0 0
      %2028 = vmatpush1.bf16.msra.mxu0 0
      %2029 = vmatprep.subr.bf16.mxu0 0
      %2030 = vmatpush1.bf16.msra.mxu0 0
      %2031 = vmatprep.subr.bf16.mxu0 0
      %2032 = vmatpush1.bf16.msra.mxu0 0
      %2033 = vmatprep.mubr.bf16.mxu0 0
      %2034 = vmatmul.mubr.bf16.gmra.mrb[0].mxu0 %v1996
      %v2035 = vpop.f32.mrb[0].mxu0
      %v2036 = vadd.f32 0.0, %v2035
      %v2037 = vpop.f32.mrb[0].mxu0
      %v2038 = vpop.f32.mrb[0].mxu0
      %v2039 = vadd.f32 0.0, %v2038
      %v2040 = vpop.f32.mrb[0].mxu0
      %2041 = vdwg.mxu0
      %v2043 = vsel %vm1470, %v1941, 0
      %v2046 = vsel %vm1950, %v1945, 0
      %2048 = vmatprep.subr.bf16.mxu0 0
      %2049 = vmatpush1.bf16.msra.mxu0 %v2046
      %2050 = vmatprep.subr.bf16.mxu0 0
      %2051 = vmatpush1.bf16.msra.mxu0 0
      %2052 = vmatprep.subr.bf16.mxu0 0
      %2053 = vmatpush1.bf16.msra.mxu0 0
      %2054 = vmatprep.subr.bf16.mxu0 0
      %2055 = vmatpush1.bf16.msra.mxu0 0
      %2056 = vmatprep.subr.bf16.mxu0 0
      %2057 = vmatpush1.bf16.msra.mxu0 0
      %2058 = vmatprep.subr.bf16.mxu0 0
      %2059 = vmatpush1.bf16.msra.mxu0 0
      %2060 = vmatprep.subr.bf16.mxu0 0
      %2061 = vmatpush1.bf16.msra.mxu0 0
      %2062 = vmatprep.subr.bf16.mxu0 0
      %2063 = vmatpush1.bf16.msra.mxu0 0
      %2064 = vmatprep.subr.bf16.mxu0 0
      %2065 = vmatpush1.bf16.msra.mxu0 0
      %2066 = vmatprep.subr.bf16.mxu0 0
      %2067 = vmatpush1.bf16.msra.mxu0 0
      %2068 = vmatprep.subr.bf16.mxu0 0
      %2069 = vmatpush1.bf16.msra.mxu0 0
      %2070 = vmatprep.subr.bf16.mxu0 0
      %2071 = vmatpush1.bf16.msra.mxu0 0
      %2072 = vmatprep.subr.bf16.mxu0 0
      %2073 = vmatpush1.bf16.msra.mxu0 0
      %2074 = vmatprep.subr.bf16.mxu0 0
      %2075 = vmatpush1.bf16.msra.mxu0 0
      %2076 = vmatprep.subr.bf16.mxu0 0
      %2077 = vmatpush1.bf16.msra.mxu0 0
      %2078 = vmatprep.subr.bf16.mxu0 0
      %2079 = vmatpush1.bf16.msra.mxu0 0
      %2080 = vmatprep.mubr.bf16.mxu0 0
      %2081 = vmatmul.mubr.bf16.gmra.mrb[0].mxu0 %v2043
      %v2082 = vpop.f32.mrb[0].mxu0
      %v2083 = vadd.f32 0.0, %v2082
      %v2084 = vpop.f32.mrb[0].mxu0
      %v2085 = vpop.f32.mrb[0].mxu0
      %v2086 = vadd.f32 0.0, %v2085
      %v2087 = vpop.f32.mrb[0].mxu0
      %2088 = vdwg.mxu0
      %v2090 = vsel %vm1470, %v1942, 0
      %v2093 = vsel %vm1950, %v1946, 0
      %2095 = vmatprep.subr.bf16.mxu0 0
      %2096 = vmatpush1.bf16.msra.mxu0 %v2093
      %2097 = vmatprep.subr.bf16.mxu0 0
      %2098 = vmatpush1.bf16.msra.mxu0 0
      %2099 = vmatprep.subr.bf16.mxu0 0
      %2100 = vmatpush1.bf16.msra.mxu0 0
      %2101 = vmatprep.subr.bf16.mxu0 0
      %2102 = vmatpush1.bf16.msra.mxu0 0
      %2103 = vmatprep.subr.bf16.mxu0 0
      %2104 = vmatpush1.bf16.msra.mxu0 0
      %2105 = vmatprep.subr.bf16.mxu0 0
      %2106 = vmatpush1.bf16.msra.mxu0 0
      %2107 = vmatprep.subr.bf16.mxu0 0
      %2108 = vmatpush1.bf16.msra.mxu0 0
      %2109 = vmatprep.subr.bf16.mxu0 0
      %2110 = vmatpush1.bf16.msra.mxu0 0
      %2111 = vmatprep.subr.bf16.mxu0 0
      %2112 = vmatpush1.bf16.msra.mxu0 0
      %2113 = vmatprep.subr.bf16.mxu0 0
      %2114 = vmatpush1.bf16.msra.mxu0 0
      %2115 = vmatprep.subr.bf16.mxu0 0
      %2116 = vmatpush1.bf16.msra.mxu0 0
      %2117 = vmatprep.subr.bf16.mxu0 0
      %2118 = vmatpush1.bf16.msra.mxu0 0
      %2119 = vmatprep.subr.bf16.mxu0 0
      %2120 = vmatpush1.bf16.msra.mxu0 0
      %2121 = vmatprep.subr.bf16.mxu0 0
      %2122 = vmatpush1.bf16.msra.mxu0 0
      %2123 = vmatprep.subr.bf16.mxu0 0
      %2124 = vmatpush1.bf16.msra.mxu0 0
      %2125 = vmatprep.subr.bf16.mxu0 0
      %2126 = vmatpush1.bf16.msra.mxu0 0
      %2127 = vmatprep.mubr.bf16.mxu0 0
      %2128 = vmatmul.mubr.bf16.gmra.mrb[0].mxu0 %v2090
      %v2129 = vpop.f32.mrb[0].mxu0
      %v2130 = vadd.f32 0.0, %v2129
      %v2131 = vpop.f32.mrb[0].mxu0
      %v2132 = vpop.f32.mrb[0].mxu0
      %v2133 = vadd.f32 0.0, %v2132
      %v2134 = vpop.f32.mrb[0].mxu0
      %2135 = vdwg.mxu0
      %v2136 = vsel %vm631, %v1989, 0.0
      %v2137 = vsel %vm631, %v2036, 0.0
      %v2138 = vadd.f32 %v2136, %v2137
      %v2139 = vsel %vm631, %v2083, 0.0
      %v2140 = vadd.f32 %v2138, %v2139
      %v2141 = vsel %vm631, %v2130, 0.0
      %v2142 = vadd.f32 %v2140, %v2141
      %v2143 = vsel %vm631, %v1992, 0.0
      %v2144 = vsel %vm631, %v2039, 0.0
      %v2145 = vadd.f32 %v2143, %v2144
      %v2146 = vsel %vm631, %v2086, 0.0
      %v2147 = vadd.f32 %v2145, %v2146
      %v2148 = vsel %vm631, %v2133, 0.0
      %v2149 = vadd.f32 %v2147, %v2148
      %v2150 = vlaneseq
      %v2151 = vshrl.u32 %v2150, 7
      %v2152 = vsub.s32 3, %v2151
      %v2153 = vrot.slane %v613, %v2152
      %v2154 = vadd.f32 %v2142, %v2153
      %v2155 = vadd.f32 %v2149, %v2153
      %v2156 = vadd.f32 %v610, %v2154
      %v2157 = vadd.f32 %v611, %v2155
      %v2158 = vsel %vm631, %v2156, 0.0
      %v2159 = vsel %vm631, %v2157, 0.0
      %v2160 = vadd.f32 %v2158, %v2159
      %v2161 = vrot.slane %v2160, 4
      %v2162 = vadd.f32 %v2160, %v2161
      %v2163 = vrot.slane %v2162, 2
      %v2164 = vadd.f32 %v2162, %v2163
      %v2165 = vrot.slane %v2164, 1
      %v2166 = vadd.f32 %v2164, %v2165
      %v2167 = vmul.f32 %v2166, %v744
      %v2168 = vsub.f32 %v2156, %v2167
      %v2169 = vsub.f32 %v2157, %v2167
      %v2170 = vmul.f32 %v2168, %v2168
      %v2171 = vmul.f32 %v2169, %v2169
      %v2172 = vsel %vm631, %v2170, 0.0
      %v2173 = vsel %vm631, %v2171, 0.0
      %v2174 = vadd.f32 %v2172, %v2173
      %v2175 = vrot.slane %v2174, 4
      %v2176 = vadd.f32 %v2174, %v2175
      %v2177 = vrot.slane %v2176, 2
      %v2178 = vadd.f32 %v2176, %v2177
      %v2179 = vrot.slane %v2178, 1
      %v2180 = vadd.f32 %v2178, %v2179
      %v2181 = vmul.f32 %v2180, %v744
      %v2182 = vadd.f32 %v2181, 1e-05
      %v2183 = vrsqrt.pop %v2182
      %v2184 = vmul.f32 %v2168, %v2183
      %v2185 = vmul.f32 %v2169, %v2183
      %v2186 = vlaneseq
      %v2187 = vshrl.u32 %v2186, 7
      %v2188 = vsub.s32 4, %v2187
      %v2189 = vrot.slane %v613, %v2188
      %v2190 = vmul.f32 %v2184, %v2189
      %v2191 = vmul.f32 %v2185, %v2189
      %v2192 = vlaneseq
      %v2193 = vshrl.u32 %v2192, 7
      %v2194 = vsub.s32 5, %v2193
      %v2195 = vrot.slane %v613, %v2194
      %v2196 = vadd.f32 %v2190, %v2195
      %v2197 = vadd.f32 %v2191, %v2195
      %v2198 = vadd.f32 %v774, %v2196
      %v2199 = vadd.f32 %v775, %v2197
      %v2200 = vpack.c.bf16 %v2199, %v2198
      %v2201 = vld [vmem:[%s526] sm:$0xf]
      %v2202 = vld [vmem:[%s526 + $0x4] sm:$0xf]
      %v2203 = vld [vmem:[%s526 + $0x8] sm:$0xf]
      %v2204 = vld [vmem:[%s526 + $0xc] sm:$0xf]
      %v2205 = vld [vmem:[%s539] sm:$0x1]
      %v2207 = vlaneseq
      %v2208 = vshrl.u32 %v2207, 7
      %v2209 = vsub.s32 0, %v2208
      %v2210 = vrot.slane %v2205, %v2209
      %v2216 = vunpack.c.l.b16 %v2201
      %v2217 = vunpack.c.l.b16 %v2202
      %v2218 = vunpack.c.l.b16 %v2203
      %v2219 = vunpack.c.l.b16 %v2204
      %v2220 = vpack.c.b16 %v2217, %v2216
      %v2221 = vpack.c.b16 %v2219, %v2218
      %v2225 = vsel %vm631, %v2200, 0
      %2227 = vmatprep.subr.bf16.mxu0 0
      %2228 = vmatpush1.bf16.msra.mxu0 %v2220
      %2229 = vmatprep.subr.bf16.mxu0 0
      %2230 = vmatpush1.bf16.msra.mxu0 %v2221
      %2231 = vmatprep.subr.bf16.mxu0 0
      %2232 = vmatpush1.bf16.msra.mxu0 0
      %2233 = vmatprep.subr.bf16.mxu0 0
      %2234 = vmatpush1.bf16.msra.mxu0 0
      %2235 = vmatprep.subr.bf16.mxu0 0
      %2236 = vmatpush1.bf16.msra.mxu0 0
      %2237 = vmatprep.subr.bf16.mxu0 0
      %2238 = vmatpush1.bf16.msra.mxu0 0
      %2239 = vmatprep.subr.bf16.mxu0 0
      %2240 = vmatpush1.bf16.msra.mxu0 0
      %2241 = vmatprep.subr.bf16.mxu0 0
      %2242 = vmatpush1.bf16.msra.mxu0 0
      %2243 = vmatprep.subr.bf16.mxu0 0
      %2244 = vmatpush1.bf16.msra.mxu0 0
      %2245 = vmatprep.subr.bf16.mxu0 0
      %2246 = vmatpush1.bf16.msra.mxu0 0
      %2247 = vmatprep.subr.bf16.mxu0 0
      %2248 = vmatpush1.bf16.msra.mxu0 0
      %2249 = vmatprep.subr.bf16.mxu0 0
      %2250 = vmatpush1.bf16.msra.mxu0 0
      %2251 = vmatprep.subr.bf16.mxu0 0
      %2252 = vmatpush1.bf16.msra.mxu0 0
      %2253 = vmatprep.subr.bf16.mxu0 0
      %2254 = vmatpush1.bf16.msra.mxu0 0
      %2255 = vmatprep.subr.bf16.mxu0 0
      %2256 = vmatpush1.bf16.msra.mxu0 0
      %2257 = vmatprep.subr.bf16.mxu0 0
      %2258 = vmatpush1.bf16.msra.mxu0 0
      %2259 = vmatprep.mubr.bf16.mxu0 0
      %2260 = vmatmul.mubr.bf16.gmra.mrb[0].mxu0 %v2225
      %v2261 = vpop.f32.mrb[0].mxu0
      %v2262 = vadd.f32 %v2210, %v2261
      %v2263 = vpop.f32.mrb[0].mxu0
      %v2264 = vpop.f32.mrb[0].mxu0
      %v2265 = vadd.f32 %v2210, %v2264
      %v2266 = vpop.f32.mrb[0].mxu0
      %2267 = vdwg.mxu0
      %v2268 = vmax.f32 %v2262, 0.0
      %v2269 = vmax.f32 %v2265, 0.0
      %v2270 = vpack.c.bf16 %v2269, %v2268
      %v2271 = vld [vmem:[%s531] sm:$0xf]
      %v2272 = vld [vmem:[%s531 + $0x4] sm:$0xf]
      %v2273 = vld [vmem:[%s531 + $0x8] sm:$0xf]
      %v2274 = vld [vmem:[%s531 + $0xc] sm:$0xf]
      %v2275 = vld [vmem:[%s531 + $0x10] sm:$0xf]
      %v2276 = vld [vmem:[%s531 + $0x14] sm:$0xf]
      %v2277 = vld [vmem:[%s531 + $0x18] sm:$0xf]
      %v2278 = vld [vmem:[%s531 + $0x1c] sm:$0xf]
      %v2279 = vlaneseq
      %v2280 = vshrl.u32 %v2279, 7
      %v2281 = vsub.s32 6, %v2280
      %v2282 = vrot.slane %v613, %v2281
      %v2291 = vunpack.c.l.b16 %v2271
      %v2292 = vunpack.c.l.b16 %v2272
      %v2293 = vunpack.c.l.b16 %v2273
      %v2294 = vunpack.c.l.b16 %v2274
      %v2295 = vunpack.c.l.b16 %v2275
      %v2296 = vunpack.c.l.b16 %v2276
      %v2297 = vunpack.c.l.b16 %v2277
      %v2298 = vunpack.c.l.b16 %v2278
      %v2299 = vpack.c.b16 %v2292, %v2291
      %v2300 = vpack.c.b16 %v2294, %v2293
      %v2301 = vpack.c.b16 %v2296, %v2295
      %v2302 = vpack.c.b16 %v2298, %v2297
      %vm2307 = vcmask 523264
      %v2309 = vsel %vm2307, %v2270, 0
      %2311 = vmatprep.subr.bf16.mxu0 0
      %2312 = vmatpush1.bf16.msra.mxu0 %v2299
      %2313 = vmatprep.subr.bf16.mxu0 0
      %2314 = vmatpush1.bf16.msra.mxu0 %v2300
      %2315 = vmatprep.subr.bf16.mxu0 0
      %2316 = vmatpush1.bf16.msra.mxu0 %v2301
      %2317 = vmatprep.subr.bf16.mxu0 0
      %2318 = vmatpush1.bf16.msra.mxu0 %v2302
      %2319 = vmatprep.subr.bf16.mxu0 0
      %2320 = vmatpush1.bf16.msra.mxu0 0
      %2321 = vmatprep.subr.bf16.mxu0 0
      %2322 = vmatpush1.bf16.msra.mxu0 0
      %2323 = vmatprep.subr.bf16.mxu0 0
      %2324 = vmatpush1.bf16.msra.mxu0 0
      %2325 = vmatprep.subr.bf16.mxu0 0
      %2326 = vmatpush1.bf16.msra.mxu0 0
      %2327 = vmatprep.subr.bf16.mxu0 0
      %2328 = vmatpush1.bf16.msra.mxu0 0
      %2329 = vmatprep.subr.bf16.mxu0 0
      %2330 = vmatpush1.bf16.msra.mxu0 0
      %2331 = vmatprep.subr.bf16.mxu0 0
      %2332 = vmatpush1.bf16.msra.mxu0 0
      %2333 = vmatprep.subr.bf16.mxu0 0
      %2334 = vmatpush1.bf16.msra.mxu0 0
      %2335 = vmatprep.subr.bf16.mxu0 0
      %2336 = vmatpush1.bf16.msra.mxu0 0
      %2337 = vmatprep.subr.bf16.mxu0 0
      %2338 = vmatpush1.bf16.msra.mxu0 0
      %2339 = vmatprep.subr.bf16.mxu0 0
      %2340 = vmatpush1.bf16.msra.mxu0 0
      %2341 = vmatprep.subr.bf16.mxu0 0
      %2342 = vmatpush1.bf16.msra.mxu0 0
      %2343 = vmatprep.mubr.bf16.mxu0 0
      %2344 = vmatmul.mubr.bf16.gmra.mrb[0].mxu0 %v2309
      %v2345 = vpop.f32.mrb[0].mxu0
      %v2346 = vadd.f32 %v2282, %v2345
      %v2347 = vpop.f32.mrb[0].mxu0
      %v2348 = vpop.f32.mrb[0].mxu0
      %v2349 = vadd.f32 %v2282, %v2348
      %v2350 = vpop.f32.mrb[0].mxu0
      %2351 = vdwg.mxu0
      %v2352 = vadd.f32 %v2198, %v2346
      %v2353 = vadd.f32 %v2199, %v2349
      %v2354 = vsel %vm631, %v2352, 0.0
      %v2355 = vsel %vm631, %v2353, 0.0
      %v2356 = vadd.f32 %v2354, %v2355
      %v2357 = vrot.slane %v2356, 4
      %v2358 = vadd.f32 %v2356, %v2357
      %v2359 = vrot.slane %v2358, 2
      %v2360 = vadd.f32 %v2358, %v2359
      %v2361 = vrot.slane %v2360, 1
      %v2362 = vadd.f32 %v2360, %v2361
      %v2363 = vmul.f32 %v2362, %v744
      %v2364 = vsub.f32 %v2352, %v2363
      %v2365 = vsub.f32 %v2353, %v2363
      %v2366 = vmul.f32 %v2364, %v2364
      %v2367 = vmul.f32 %v2365, %v2365
      %v2368 = vsel %vm631, %v2366, 0.0
      %v2369 = vsel %vm631, %v2367, 0.0
      %v2370 = vadd.f32 %v2368, %v2369
      %v2371 = vrot.slane %v2370, 4
      %v2372 = vadd.f32 %v2370, %v2371
      %v2373 = vrot.slane %v2372, 2
      %v2374 = vadd.f32 %v2372, %v2373
      %v2375 = vrot.slane %v2374, 1
      %v2376 = vadd.f32 %v2374, %v2375
      %v2377 = vmul.f32 %v2376, %v744
      %v2378 = vadd.f32 %v2377, 1e-05
      %v2379 = vrsqrt.pop %v2378
      %v2380 = vmul.f32 %v2364, %v2379
      %v2381 = vmul.f32 %v2365, %v2379
      %v2382 = vlaneseq
      %v2383 = vshrl.u32 %v2382, 7
      %v2384 = vsub.s32 7, %v2383
      %v2385 = vrot.slane %v613, %v2384
      %v2386 = vmul.f32 %v2380, %v2385
      %v2387 = vmul.f32 %v2381, %v2385
      %v2388 = vlaneseq
      %v2389 = vshrl.u32 %v2388, 7
      %v2390 = vsub.s32 0, %v2389
      %v2391 = vrot.slane %v614, %v2390
      %v2392 = vadd.f32 %v2386, %v2391
      %v2393 = vadd.f32 %v2387, %v2391
      %2394 = vst.msk [vmem:[#allocation2] sm:$0xff] %vm631, %v2392
      %2395 = vst.msk [vmem:[#allocation2 + $0x8] sm:$0xff] %vm631, %v2393
      %p2396 = scmp.eq.s32.totalorder %s24, 1
      // Predicated region
      $region77: #{gps_model.1} parent=71 // pred_check
        %p2397 = pneg %p2396
      $region78: #{gps_model.1} parent=71 // pred_check_branch
        %2399 = sbr.rel (%p2397) target = $region80
      $region79: #{gps_model.1} parent=71 // pred_region
        %v2400 = vpack.c.bf16 %v2393, %v2392
        %v2401 = vld [vmem:[%s4] sm:$0xf]
        %v2402 = vld [vmem:[%s4 + $0x4] sm:$0xf]
        %v2403 = vld [vmem:[%s4 + $0x8] sm:$0xf]
        %v2404 = vld [vmem:[%s4 + $0xc] sm:$0xf]
        %v2405 = vld [vmem:[%s5] sm:$0x1]
        %v2407 = vlaneseq
        %v2408 = vshrl.u32 %v2407, 7
        %v2409 = vsub.s32 0, %v2408
        %v2410 = vrot.slane %v2405, %v2409
        %v2416 = vunpack.c.l.b16 %v2401
        %v2417 = vunpack.c.l.b16 %v2402
        %v2418 = vunpack.c.l.b16 %v2403
        %v2419 = vunpack.c.l.b16 %v2404
        %v2420 = vpack.c.b16 %v2417, %v2416
        %v2421 = vpack.c.b16 %v2419, %v2418
        %v2425 = vsel %vm631, %v2400, 0
        %2427 = vmatprep.subr.bf16.mxu0 0
        %2428 = vmatpush1.bf16.msra.mxu0 %v2420
        %2429 = vmatprep.subr.bf16.mxu0 0
        %2430 = vmatpush1.bf16.msra.mxu0 %v2421
        %2431 = vmatprep.subr.bf16.mxu0 0
        %2432 = vmatpush1.bf16.msra.mxu0 0
        %2433 = vmatprep.subr.bf16.mxu0 0
        %2434 = vmatpush1.bf16.msra.mxu0 0
        %2435 = vmatprep.subr.bf16.mxu0 0
        %2436 = vmatpush1.bf16.msra.mxu0 0
        %2437 = vmatprep.subr.bf16.mxu0 0
        %2438 = vmatpush1.bf16.msra.mxu0 0
        %2439 = vmatprep.subr.bf16.mxu0 0
        %2440 = vmatpush1.bf16.msra.mxu0 0
        %2441 = vmatprep.subr.bf16.mxu0 0
        %2442 = vmatpush1.bf16.msra.mxu0 0
        %2443 = vmatprep.subr.bf16.mxu0 0
        %2444 = vmatpush1.bf16.msra.mxu0 0
        %2445 = vmatprep.subr.bf16.mxu0 0
        %2446 = vmatpush1.bf16.msra.mxu0 0
        %2447 = vmatprep.subr.bf16.mxu0 0
        %2448 = vmatpush1.bf16.msra.mxu0 0
        %2449 = vmatprep.subr.bf16.mxu0 0
        %2450 = vmatpush1.bf16.msra.mxu0 0
        %2451 = vmatprep.subr.bf16.mxu0 0
        %2452 = vmatpush1.bf16.msra.mxu0 0
        %2453 = vmatprep.subr.bf16.mxu0 0
        %2454 = vmatpush1.bf16.msra.mxu0 0
        %2455 = vmatprep.subr.bf16.mxu0 0
        %2456 = vmatpush1.bf16.msra.mxu0 0
        %2457 = vmatprep.subr.bf16.mxu0 0
        %2458 = vmatpush1.bf16.msra.mxu0 0
        %2459 = vmatprep.mubr.bf16.mxu0 0
        %2460 = vmatmul.mubr.bf16.gmra.mrb[0].mxu0 %v2425
        %v2461 = vpop.f32.mrb[0].mxu0
        %v2462 = vadd.f32 %v2410, %v2461
        %v2463 = vpop.f32.mrb[0].mxu0
        %v2464 = vpop.f32.mrb[0].mxu0
        %v2465 = vadd.f32 %v2410, %v2464
        %v2466 = vpop.f32.mrb[0].mxu0
        %2467 = vdwg.mxu0
        %vm2468 = vcmask 31744
        %2469 = vst.msk [vmem:[%s13] sm:$0xff] %vm2468, %v2462
        %2470 = vst.msk [vmem:[%s13 + $0x8] sm:$0xff] %vm2468, %v2465
      $region80: #{gps_model.1} parent=71 // pred_fallthru
        _
      // Predicated region
      $region81: #{gps_model.1} parent=71 // pred_check
        %p2471 = pneg %p345
      $region82: #{gps_model.1} parent=71 // pred_check_branch
        %2473 = sbr.rel (%p2471) target = $region84
      $region83: #{gps_model.1} parent=71 // pred_region
        _
      $region84: #{gps_model.1} parent=71 // pred_fallthru
        _
      // Predicated region
      $region85: #{gps_model.1} parent=71 // pred_check
        %p2474 = pneg %p345
      $region86: #{gps_model.1} parent=71 // pred_check_branch
        %2476 = sbr.rel (%p2474) target = $region88
      $region87: #{gps_model.1} parent=71 // pred_region
        _
      $region88: #{gps_model.1} parent=71 // pred_fallthru
        _
    $region72: #{gps_model.1} parent=5 // pred_fallthru
      _
    %p2477 = scmp.le.s32.totalorder 2, %s19
    // Predicated region
    $region89: #{gps_model.1} parent=5 // pred_check
      %p2478 = pneg %p2477
    $region90: #{gps_model.1} parent=5 // pred_check_branch
      %2480 = sbr.rel (%p2478) target = $region92
    $region91: #{gps_model.1} parent=5 // pred_region
      %s2481 = ssub.s32 %s19, 2
    $region92: #{gps_model.1} parent=5 // pred_fallthru
      _
  $region6: #{gps_model.1} parent=0 // loop_footer
    %s23 = sadd.s32 1, %s19
  $region7: #{gps_model.1} parent=0 // loop_footer_branch
    %18 = sbr.rel target = $region3
  $region8: #{gps_model.1} parent=0 // loop_exit
    _

</llo_original>
